<compile_context>
chip_gen: v7x
topology: tpu7x:2x2x1
jax: 0.10.0
libtpu: 0.0.40
codegen_flags: <defaults>
</compile_context>

<pallas_src>
import jax
import jax.numpy as jnp
import numpy as np
from jax.experimental import pallas as pl
from jax.experimental.pallas import tpu as pltpu

# ---- model dimensions ----
S, V = 8, 16             # sequence length, vocab size
D_IN = S * V             # 128 flattened one-hot features
H = 64                   # hidden width of encoder / decoder / prop_pred MLPs
Z = 32                   # latent dimension
P = 3                    # number of predicted properties
PPAD = 64                # props head lane-padded so 2Z + PPAD = 128
STATS_W = 2 * Z + PPAD   # 128: [z_mu | z_logvar | props_padded]
HID_W = 2 * H            # 128: fused [hd | hp]
OUT_W = D_IN + PPAD      # 192: fused [decoded | props_padded]
EPS_W = 128              # eps lane-padded to a full vreg width
SCALE = 0.01             # reparameterize eps scale (PyTorch default)

B = 256                  # batch

# ---- packed weight slab layout (sublane row offsets, bf16, 192 lanes) ----
R_WE = 0                       # encoder hidden     (D_IN, H)     rows   0:128
R_WHEADS = R_WE + D_IN         # fused mu|logvar    (H, 2Z)       rows 128:192
R_WHID = R_WHEADS + H          # blockdiag(wd1,wp1) (2Z, 2H)      rows 192:256
R_WOUT = R_WHID + 2 * Z        # blockdiag(wd2,wp2) (2H, OUT_W)   rows 256:384
W_ROWS = R_WOUT + 2 * H        # 384
W_LANES = OUT_W                # 192


def _num_tensorcores() -> int:
    """Grid only on chips with >1 TensorCore (v7x); single step otherwise."""
    try:
        kind = jax.devices()[0].device_kind.lower()
    except Exception:
        return 1
    return 2 if ("v7" in kind or "7x" in kind) else 1


NUM_TILES = _num_tensorcores()
TILE_B = B // NUM_TILES


def chemvae_kernel(x_ref, eps_ref, w_ref, bias_ref, dec_ref, stats_ref):
    # one DMA for all biases
    bias = bias_ref[...]                         # (8, 192) f32
    be      = bias[0:1, :H]
    b_heads = bias[1:2, :2 * Z]
    b_hid   = bias[2:3, :HID_W]
    b_out   = bias[3:4, :OUT_W]

    x = x_ref[...]                               # (TILE_B, D_IN) bf16

    # ------------- encoder: Linear+tanh, fused mu|logvar head ---------------
    h = jnp.tanh(
        jnp.dot(x, w_ref[R_WE:R_WE + D_IN, :H],
                preferred_element_type=jnp.float32) + be)          # (TILE_B, H)
    heads = jnp.dot(h.astype(jnp.bfloat16),
                    w_ref[R_WHEADS:R_WHEADS + H, :2 * Z],
                    preferred_element_type=jnp.float32) + b_heads  # (TILE_B, 2Z)
    z_mu = heads[:, :Z]
    z_logvar = heads[:, Z:]

    # ------------- reparameterize: z = mu + scale*eps*exp(0.5*logvar) -------
    std = jnp.exp(0.5 * z_logvar)                # f32 (EUP)
    z = z_mu + (SCALE * eps_ref[:, :Z]) * std    # (TILE_B, Z) f32

    # ------------- fused hidden: [z | z_mu] @ blockdiag(wd1, wp1) -----------
    zz = jnp.concatenate([z, z_mu], axis=-1).astype(jnp.bfloat16)  # (TILE_B, 2Z)
    hid = jnp.tanh(
        jnp.dot(zz, w_ref[R_WHID:R_WHID + 2 * Z, :HID_W],
                preferred_element_type=jnp.float32) + b_hid)       # (TILE_B, 2H)

    # ------------- fused output: [hd | hp] @ blockdiag(wd2, wp2) ------------
    out = jnp.dot(hid.astype(jnp.bfloat16),
                  w_ref[R_WOUT:R_WOUT + 2 * H, :OUT_W],
                  preferred_element_type=jnp.float32) + b_out      # (TILE_B, 192)

    # lane-dense bf16 stores
    dec_ref[...] = out[:, :D_IN].astype(dec_ref.dtype)
    stats_ref[...] = jnp.concatenate([heads, out[:, D_IN:]],
                                     axis=-1).astype(stats_ref.dtype)


def init_params(key):
    """Returns (kernel_params, plain) — packed slabs for the kernel plus the
    plain per-layer weights used by the pure-JAX reference."""
    ks = jax.random.split(key, 14)

    def w(k, fi, fo):
        return (jax.random.normal(k, (fi, fo), jnp.float32)
                / jnp.sqrt(fi)).astype(jnp.bfloat16)

    def b(k, n):
        return 0.1 * jax.random.normal(k, (n,), jnp.float32)

    plain = dict(
        we=w(ks[0], D_IN, H),  be=b(ks[7], H),
        wmu=w(ks[1], H, Z),    bmu=b(ks[8], Z),
        wlv=w(ks[2], H, Z),    blv=b(ks[9], Z),
        wd1=w(ks[3], Z, H),    bd1=b(ks[10], H),
        wd2=w(ks[4], H, D_IN), bd2=b(ks[11], D_IN),
        wp1=w(ks[5], Z, H),    bp1=b(ks[12], H),
        wp2=w(ks[6], H, P),    bp2=b(ks[13], P),
    )

    # single packed bf16 weight slab (one DMA), block-diagonal fused layers
    slab = jnp.zeros((W_ROWS, W_LANES), jnp.bfloat16)
    slab = slab.at[R_WE:R_WE + D_IN, :H].set(plain["we"])
    slab = slab.at[R_WHEADS:R_WHEADS + H, :Z].set(plain["wmu"])
    slab = slab.at[R_WHEADS:R_WHEADS + H, Z:2 * Z].set(plain["wlv"])
    slab = slab.at[R_WHID:R_WHID + Z, :H].set(plain["wd1"])             # z -> hd
    slab = slab.at[R_WHID + Z:R_WHID + 2 * Z, H:2 * H].set(plain["wp1"])  # mu -> hp
    slab = slab.at[R_WOUT:R_WOUT + H, :D_IN].set(plain["wd2"])          # hd -> dec
    slab = slab.at[R_WOUT + H:R_WOUT + 2 * H, D_IN:D_IN + P].set(plain["wp2"])

    # single packed f32 bias slab
    bias = jnp.zeros((8, W_LANES), jnp.float32)
    bias = bias.at[0, :H].set(plain["be"])
    bias = bias.at[1, :Z].set(plain["bmu"])
    bias = bias.at[1, Z:2 * Z].set(plain["blv"])
    bias = bias.at[2, :H].set(plain["bd1"])
    bias = bias.at[2, H:2 * H].set(plain["bp1"])
    bias = bias.at[3, :D_IN].set(plain["bd2"])
    bias = bias.at[3, D_IN:D_IN + P].set(plain["bp2"])

    return (slab, bias), plain


@jax.jit
def chemvae_forward(x, eps, kernel_params):
    """x: (B, S, V) float32 one-hot; eps: (B, Z) float32 standard-normal draws.
    Returns bf16 outputs (cast downstream if f32 is required)."""
    w_slab, bias = kernel_params
    x_flat = x.reshape(B, D_IN).astype(jnp.bfloat16)          # one-hot -> exact
    eps128 = jnp.pad(eps, ((0, 0), (0, EPS_W - Z)))           # lane-dense eps

    inputs = (x_flat, eps128, w_slab, bias)

    # cost hint: 4 fused matmuls, 3 tanh layers + one exp per row
    flops = 2 * B * (D_IN * H + H * 2 * Z + 2 * Z * HID_W + HID_W * OUT_W)
    transc = B * (3 * H + Z)
    in_bytes = sum(int(np.prod(a.shape)) * a.dtype.itemsize for a in inputs)
    out_bytes = B * (D_IN + STATS_W) * 2                      # bf16 outputs
    cost = pl.CostEstimate(flops=flops, transcendentals=transc,
                           bytes_accessed=in_bytes + out_bytes)

    batched = lambda i: (i, 0)      # x / eps / outputs: tiled along batch
    resident = lambda i: (0, 0)     # packed weights / biases: constant block

    grid_spec = pltpu.PrefetchScalarGridSpec(
        num_scalar_prefetch=0,
        grid=(NUM_TILES,),          # 1 on v5e/v6e (single TC), 2 on v7x
        in_specs=[
            pl.BlockSpec((TILE_B, D_IN), batched),      # x
            pl.BlockSpec((TILE_B, EPS_W), batched),     # eps (lane-padded)
            pl.BlockSpec((W_ROWS, W_LANES), resident),  # packed weight slab
            pl.BlockSpec((8, W_LANES), resident),       # packed bias slab
        ],
        out_specs=[
            pl.BlockSpec((TILE_B, D_IN), batched),      # decoded (flat)
            pl.BlockSpec((TILE_B, STATS_W), batched),   # [z_mu|z_logvar|props]
        ],
    )

    dec_flat, stats = pl.pallas_call(
        chemvae_kernel,
        out_shape=(
            jax.ShapeDtypeStruct((B, D_IN), jnp.bfloat16),
            jax.ShapeDtypeStruct((B, STATS_W), jnp.bfloat16),
        ),
        grid_spec=grid_spec,
        compiler_params=pltpu.CompilerParams(
            dimension_semantics=("parallel",)),         # shards tiles on v7x
        cost_estimate=cost,
    )(*inputs)

    z_mu = stats[:, :Z]
    z_logvar = stats[:, Z:2 * Z]
    props = stats[:, 2 * Z:2 * Z + P]
    decoded = dec_flat.reshape(B, S, V)
    return z_mu, z_logvar, decoded, props


def chemvae_ref(x, eps, plain):
    """Pure-JAX reference mirroring the PyTorch module (same bf16 matmul
    operands / f32 accumulation / bf16 final outputs)."""
    f32 = jnp.float32
    bf16 = jnp.bfloat16
    xf = x.reshape(B, D_IN).astype(bf16)

    h = jnp.tanh(jnp.dot(xf, plain["we"], preferred_element_type=f32) + plain["be"])
    hb = h.astype(bf16)
    z_mu = jnp.dot(hb, plain["wmu"], preferred_element_type=f32) + plain["bmu"]
    z_logvar = jnp.dot(hb, plain["wlv"], preferred_element_type=f32) + plain["blv"]

    z = z_mu + (SCALE * eps) * jnp.exp(0.5 * z_logvar)

    hd = jnp.tanh(jnp.dot(z.astype(bf16), plain["wd1"],
                          preferred_element_type=f32) + plain["bd1"])
    dec = jnp.dot(hd.astype(bf16), plain["wd2"],
                  preferred_element_type=f32) + plain["bd2"]

    hp = jnp.tanh(jnp.dot(z_mu.astype(bf16), plain["wp1"],
                          preferred_element_type=f32) + plain["bp1"])
    props = jnp.dot(hp.astype(bf16), plain["wp2"],
                    preferred_element_type=f32) + plain["bp2"]

    return (z_mu.astype(bf16), z_logvar.astype(bf16),
            dec.reshape(B, S, V).astype(bf16), props.astype(bf16))


if __name__ == "__main__":
    key = jax.random.PRNGKey(0)
    k_param, k_x, k_eps = jax.random.split(key, 3)

    kernel_params, plain = init_params(k_param)

    # synthetic one-hot SMILES batch: (B, S, V)
    idx = jax.random.randint(k_x, (B, S), 0, V)
    x = jax.nn.one_hot(idx, V, dtype=jnp.float32)

    # eps drawn outside the kernel (torch.randn_like equivalent), deterministic
    eps = jax.random.normal(k_eps, (B, Z), jnp.float32)

    outs = chemvae_forward(x, eps, kernel_params)
    jax.block_until_ready(outs)
    z_mu, z_logvar, decoded, props = outs

    assert z_mu.shape == (B, Z)
    assert z_logvar.shape == (B, Z)
    assert decoded.shape == (B, S, V)
    assert props.shape == (B, P)

    # numerical check against the pure-JAX reference
    refs = chemvae_ref(x, eps, plain)
    for got, want in zip(outs, refs):
        np.testing.assert_allclose(np.asarray(got.astype(jnp.float32)),
                                   np.asarray(want.astype(jnp.float32)),
                                   rtol=5e-2, atol=5e-3)

    print("KERNEL_OK")
</pallas_src>

<mosaic_0001>
module attributes {stable_mosaic.version = 11 : i64} {
  func.func @chemvae_kernel(%arg0: i32, %arg1: memref<256x128xbf16, #tpu.memory_space<vmem>>, %arg2: memref<256x128xf32, #tpu.memory_space<vmem>>, %arg3: memref<384x192xbf16, #tpu.memory_space<vmem>>, %arg4: memref<8x192xf32, #tpu.memory_space<vmem>>, %arg5: memref<256x128xbf16, #tpu.memory_space<vmem>>, %arg6: memref<256x128xbf16, #tpu.memory_space<vmem>>) attributes {dimension_semantics = [#tpu.dimension_semantics<parallel>], iteration_bounds = array<i64: 1>, scalar_prefetch = 0 : i64, scratch_operands = 0 : i64, tpu.core_type = #tpu.core_type<tc>, window_params = [{transform_indices = @transform_0, window_bounds = array<i64: 256, 128>}, {transform_indices = @transform_1, window_bounds = array<i64: 256, 128>}, {pipeline_mode = #tpu.pipeline_mode<synchronous>, transform_indices = @transform_2, window_bounds = array<i64: 384, 192>}, {pipeline_mode = #tpu.pipeline_mode<synchronous>, transform_indices = @transform_3, window_bounds = array<i64: 8, 192>}, {transform_indices = @transform_4, window_bounds = array<i64: 256, 128>}, {transform_indices = @transform_5, window_bounds = array<i64: 256, 128>}]} {
    %c0 = arith.constant 0 : index
    %c0_0 = arith.constant 0 : index
    %0 = vector.load %arg4[%c0, %c0_0] : memref<8x192xf32, #tpu.memory_space<vmem>>, vector<8x192xf32>
    %1 = vector.extract_strided_slice %0 {offsets = [0, 0], sizes = [1, 64], strides = [1, 1]} : vector<8x192xf32> to vector<1x64xf32>
    %2 = vector.extract_strided_slice %0 {offsets = [1, 0], sizes = [1, 64], strides = [1, 1]} : vector<8x192xf32> to vector<1x64xf32>
    %3 = vector.extract_strided_slice %0 {offsets = [2, 0], sizes = [1, 128], strides = [1, 1]} : vector<8x192xf32> to vector<1x128xf32>
    %4 = vector.extract_strided_slice %0 {offsets = [3, 0], sizes = [1, 192], strides = [1, 1]} : vector<8x192xf32> to vector<1x192xf32>
    %c0_1 = arith.constant 0 : index
    %c0_2 = arith.constant 0 : index
    %5 = vector.load %arg1[%c0_1, %c0_2] : memref<256x128xbf16, #tpu.memory_space<vmem>>, vector<256x128xbf16>
    %c0_3 = arith.constant 0 : index
    %c0_4 = arith.constant 0 : index
    %6 = vector.load %arg3[%c0_3, %c0_4] : memref<384x192xbf16, #tpu.memory_space<vmem>>, vector<128x64xbf16>
    %cst = arith.constant dense<0.000000e+00> : vector<256x64xf32>
    %7 = tpu.matmul %5, %6, %cst {dimension_numbers = #tpu.dot_dimension_numbers<[1], [0], [0], [1], [0, 0, 1, 1], [], []>} : vector<256x128xbf16>, vector<128x64xbf16>, vector<256x64xf32> -> vector<256x64xf32>
    %8 = vector.broadcast %1 : vector<1x64xf32> to vector<256x64xf32>
    %9 = arith.addf %7, %8 : vector<256x64xf32>
    %10 = math.tanh %9 : vector<256x64xf32>
    %11 = arith.truncf %10 : vector<256x64xf32> to vector<256x64xbf16>
    %c128 = arith.constant 128 : index
    %c0_5 = arith.constant 0 : index
    %12 = vector.load %arg3[%c128, %c0_5] : memref<384x192xbf16, #tpu.memory_space<vmem>>, vector<64x64xbf16>
    %cst_6 = arith.constant dense<0.000000e+00> : vector<256x64xf32>
    %13 = tpu.matmul %11, %12, %cst_6 {dimension_numbers = #tpu.dot_dimension_numbers<[1], [0], [0], [1], [0, 0, 1, 1], [], []>} : vector<256x64xbf16>, vector<64x64xbf16>, vector<256x64xf32> -> vector<256x64xf32>
    %14 = vector.broadcast %2 : vector<1x64xf32> to vector<256x64xf32>
    %15 = arith.addf %13, %14 : vector<256x64xf32>
    %16 = vector.extract_strided_slice %15 {offsets = [0, 0], sizes = [256, 32], strides = [1, 1]} : vector<256x64xf32> to vector<256x32xf32>
    %17 = vector.extract_strided_slice %15 {offsets = [0, 32], sizes = [256, 32], strides = [1, 1]} : vector<256x64xf32> to vector<256x32xf32>
    %cst_7 = arith.constant 5.000000e-01 : f32
    %18 = vector.broadcast %cst_7 : f32 to vector<256x32xf32>
    %19 = arith.mulf %18, %17 : vector<256x32xf32>
    %20 = math.exp %19 : vector<256x32xf32>
    %c0_8 = arith.constant 0 : index
    %c0_9 = arith.constant 0 : index
    %21 = vector.load %arg2[%c0_8, %c0_9] : memref<256x128xf32, #tpu.memory_space<vmem>>, vector<256x32xf32>
    %cst_10 = arith.constant 0.00999999977 : f32
    %22 = vector.broadcast %cst_10 : f32 to vector<256x32xf32>
    %23 = arith.mulf %22, %21 : vector<256x32xf32>
    %24 = arith.mulf %23, %20 : vector<256x32xf32>
    %25 = arith.addf %16, %24 : vector<256x32xf32>
    %26 = tpu.concatenate %25, %16 in 1 : vector<256x32xf32>, vector<256x32xf32> -> vector<256x64xf32>
    %27 = arith.truncf %26 : vector<256x64xf32> to vector<256x64xbf16>
    %c192 = arith.constant 192 : index
    %c0_11 = arith.constant 0 : index
    %28 = vector.load %arg3[%c192, %c0_11] : memref<384x192xbf16, #tpu.memory_space<vmem>>, vector<64x128xbf16>
    %cst_12 = arith.constant dense<0.000000e+00> : vector<256x128xf32>
    %29 = tpu.matmul %27, %28, %cst_12 {dimension_numbers = #tpu.dot_dimension_numbers<[1], [0], [0], [1], [0, 0, 1, 1], [], []>} : vector<256x64xbf16>, vector<64x128xbf16>, vector<256x128xf32> -> vector<256x128xf32>
    %30 = vector.broadcast %3 : vector<1x128xf32> to vector<256x128xf32>
    %31 = arith.addf %29, %30 : vector<256x128xf32>
    %32 = math.tanh %31 : vector<256x128xf32>
    %33 = arith.truncf %32 : vector<256x128xf32> to vector<256x128xbf16>
    %c256 = arith.constant 256 : index
    %c0_13 = arith.constant 0 : index
    %34 = vector.load %arg3[%c256, %c0_13] : memref<384x192xbf16, #tpu.memory_space<vmem>>, vector<128x192xbf16>
    %cst_14 = arith.constant dense<0.000000e+00> : vector<256x192xf32>
    %35 = tpu.matmul %33, %34, %cst_14 {dimension_numbers = #tpu.dot_dimension_numbers<[1], [0], [0], [1], [0, 0, 1, 1], [], []>} : vector<256x128xbf16>, vector<128x192xbf16>, vector<256x192xf32> -> vector<256x192xf32>
    %36 = vector.broadcast %4 : vector<1x192xf32> to vector<256x192xf32>
    %37 = arith.addf %35, %36 : vector<256x192xf32>
    %38 = vector.extract_strided_slice %37 {offsets = [0, 0], sizes = [256, 128], strides = [1, 1]} : vector<256x192xf32> to vector<256x128xf32>
    %39 = arith.truncf %38 : vector<256x128xf32> to vector<256x128xbf16>
    %c0_15 = arith.constant 0 : index
    %c0_16 = arith.constant 0 : index
    %40 = vector.load %arg5[%c0_15, %c0_16] : memref<256x128xbf16, #tpu.memory_space<vmem>>, vector<256x128xbf16>
    tpu.vector_store %arg5[%c0_15, %c0_16], %39 {strides = array<i32>} : memref<256x128xbf16, #tpu.memory_space<vmem>>, vector<256x128xbf16>,
    %41 = vector.extract_strided_slice %37 {offsets = [0, 128], sizes = [256, 64], strides = [1, 1]} : vector<256x192xf32> to vector<256x64xf32>
    %42 = tpu.concatenate %15, %41 in 1 : vector<256x64xf32>, vector<256x64xf32> -> vector<256x128xf32>
    %43 = arith.truncf %42 : vector<256x128xf32> to vector<256x128xbf16>
    %c0_17 = arith.constant 0 : index
    %c0_18 = arith.constant 0 : index
    %44 = vector.load %arg6[%c0_17, %c0_18] : memref<256x128xbf16, #tpu.memory_space<vmem>>, vector<256x128xbf16>
    tpu.vector_store %arg6[%c0_17, %c0_18], %43 {strides = array<i32>} : memref<256x128xbf16, #tpu.memory_space<vmem>>, vector<256x128xbf16>,
    return
  }
  func.func @transform_0(%arg0: i32) -> (i32, i32) {
    %c0_i32 = arith.constant 0 : i32
    %c0_i32_0 = arith.constant 0 : i32
    return %arg0, %c0_i32 : i32, i32
  }
  func.func @transform_1(%arg0: i32) -> (i32, i32) {
    %c0_i32 = arith.constant 0 : i32
    %c0_i32_0 = arith.constant 0 : i32
    return %arg0, %c0_i32 : i32, i32
  }
  func.func @transform_2(%arg0: i32) -> (i32, i32) {
    %c0_i32 = arith.constant 0 : i32
    %c0_i32_0 = arith.constant 0 : i32
    %c0_i32_1 = arith.constant 0 : i32
    return %c0_i32, %c0_i32_0 : i32, i32
  }
  func.func @transform_3(%arg0: i32) -> (i32, i32) {
    %c0_i32 = arith.constant 0 : i32
    %c0_i32_0 = arith.constant 0 : i32
    %c0_i32_1 = arith.constant 0 : i32
    return %c0_i32, %c0_i32_0 : i32, i32
  }
  func.func @transform_4(%arg0: i32) -> (i32, i32) {
    %c0_i32 = arith.constant 0 : i32
    %c0_i32_0 = arith.constant 0 : i32
    return %arg0, %c0_i32 : i32, i32
  }
  func.func @transform_5(%arg0: i32) -> (i32, i32) {
    %c0_i32 = arith.constant 0 : i32
    %c0_i32_0 = arith.constant 0 : i32
    return %arg0, %c0_i32 : i32, i32
  }
}

</mosaic_0001>

<llo_original>
// kernel: chemvae_forward.1
$region0: #{chemvae_forward.1}
  #allocation0 [shape = 'u32[]', space=smem, size = 0x4, offset = 0x4, fixed_abs, tag = 'smem constant byte address 0x4 - core index']
  #allocation1 [shape = 'u32[144,128]{1,0:T(1,128)}', space=vmem, size = 0x12000, scoped, tag = 'internal scratch']
  %s0 = inlined_call_operand.vmem [shape: bf16[256,128], index: 0, kind: input, shape index: {}]
  %s1 = inlined_call_operand.vmem [shape: f32[256,128], index: 1, kind: input, shape index: {}]
  %s2 = inlined_call_operand.vmem [shape: bf16[384,192], index: 2, kind: input, shape index: {}]
  %s3 = inlined_call_operand.vmem [shape: f32[8,192], index: 3, kind: input, shape index: {}]
  %s4 = inlined_call_operand.vmem [shape: bf16[256,128], index: 4, kind: output, shape index: {0}]
  %s5 = inlined_call_operand.vmem [shape: bf16[256,128], index: 5, kind: output, shape index: {1}]
  %6 = xla_tuple %s4, %s5
  %s7 = sld [smem:[#allocation0]]
  $region34: #{chemvae_forward.1} parent=0
    _
  %s9 = ssub.s32 1, %s7
  %s10 = scalar_select 0, %s9, %s7
  // Predicated region
  $region2: #{chemvae_forward.1} parent=0 // pred_check
    _
  $region3: #{chemvae_forward.1} parent=0 // pred_check_branch
    %12 = sbr.rel (0) target = $region5
  $region4: #{chemvae_forward.1} parent=0 // pred_region
    _
  $region5: #{chemvae_forward.1} parent=0 // pred_fallthru
    _
  // Predicated region
  $region6: #{chemvae_forward.1} parent=0 // pred_check
    _
  $region7: #{chemvae_forward.1} parent=0 // pred_check_branch
    %14 = sbr.rel (0) target = $region9
  $region8: #{chemvae_forward.1} parent=0 // pred_region
    _
  $region9: #{chemvae_forward.1} parent=0 // pred_fallthru
    _
  // Predicated region
  $region10: #{chemvae_forward.1} parent=0 // pred_check
    _
  $region11: #{chemvae_forward.1} parent=0 // pred_check_branch
    %16 = sbr.rel (0) target = $region13
  $region12: #{chemvae_forward.1} parent=0 // pred_region
    _
  $region13: #{chemvae_forward.1} parent=0 // pred_fallthru
    _
  // Predicated region
  $region14: #{chemvae_forward.1} parent=0 // pred_check
    _
  $region15: #{chemvae_forward.1} parent=0 // pred_check_branch
    %18 = sbr.rel (0) target = $region17
  $region16: #{chemvae_forward.1} parent=0 // pred_region
    _
  $region17: #{chemvae_forward.1} parent=0 // pred_fallthru
    _
  %v20 = vld [vmem:[%s3] sm:$0xff]
  %v21 = vld [vmem:[%s3 + $0x8] sm:$0xff]
  %v22 = vld [vmem:[%s0] sm:$0xf]
  %v23 = vld [vmem:[%s0 + $0x4] sm:$0xf]
  %v24 = vld [vmem:[%s0 + $0x8] sm:$0xf]
  %v25 = vld [vmem:[%s0 + $0xc] sm:$0xf]
  %v26 = vld [vmem:[%s0 + $0x10] sm:$0xf]
  %v27 = vld [vmem:[%s0 + $0x14] sm:$0xf]
  %v28 = vld [vmem:[%s0 + $0x18] sm:$0xf]
  %v29 = vld [vmem:[%s0 + $0x1c] sm:$0xf]
  %v30 = vld [vmem:[%s0 + $0x20] sm:$0xf]
  %v31 = vld [vmem:[%s0 + $0x24] sm:$0xf]
  %v32 = vld [vmem:[%s0 + $0x28] sm:$0xf]
  %v33 = vld [vmem:[%s0 + $0x2c] sm:$0xf]
  %v34 = vld [vmem:[%s0 + $0x30] sm:$0xf]
  %v35 = vld [vmem:[%s0 + $0x34] sm:$0xf]
  %v36 = vld [vmem:[%s0 + $0x38] sm:$0xf]
  %v37 = vld [vmem:[%s0 + $0x3c] sm:$0xf]
  %v38 = vld [vmem:[%s0 + $0x40] sm:$0xf]
  %v39 = vld [vmem:[%s0 + $0x44] sm:$0xf]
  %v40 = vld [vmem:[%s0 + $0x48] sm:$0xf]
  %v41 = vld [vmem:[%s0 + $0x4c] sm:$0xf]
  %v42 = vld [vmem:[%s0 + $0x50] sm:$0xf]
  %v43 = vld [vmem:[%s0 + $0x54] sm:$0xf]
  %v44 = vld [vmem:[%s0 + $0x58] sm:$0xf]
  %v45 = vld [vmem:[%s0 + $0x5c] sm:$0xf]
  %v46 = vld [vmem:[%s0 + $0x60] sm:$0xf]
  %v47 = vld [vmem:[%s0 + $0x64] sm:$0xf]
  %v48 = vld [vmem:[%s0 + $0x68] sm:$0xf]
  %v49 = vld [vmem:[%s0 + $0x6c] sm:$0xf]
  %v50 = vld [vmem:[%s0 + $0x70] sm:$0xf]
  %v51 = vld [vmem:[%s0 + $0x74] sm:$0xf]
  %v52 = vld [vmem:[%s0 + $0x78] sm:$0xf]
  %v53 = vld [vmem:[%s0 + $0x7c] sm:$0xf]
  %v54 = vld [vmem:[%s2] sm:$0xf]
  %v55 = vld [vmem:[%s2 + $0x8] sm:$0xf]
  %v56 = vld [vmem:[%s2 + $0x10] sm:$0xf]
  %v57 = vld [vmem:[%s2 + $0x18] sm:$0xf]
  %v58 = vld [vmem:[%s2 + $0x20] sm:$0xf]
  %v59 = vld [vmem:[%s2 + $0x28] sm:$0xf]
  %v60 = vld [vmem:[%s2 + $0x30] sm:$0xf]
  %v61 = vld [vmem:[%s2 + $0x38] sm:$0xf]
  %v62 = vld [vmem:[%s2 + $0x40] sm:$0xf]
  %v63 = vld [vmem:[%s2 + $0x48] sm:$0xf]
  %v64 = vld [vmem:[%s2 + $0x50] sm:$0xf]
  %v65 = vld [vmem:[%s2 + $0x58] sm:$0xf]
  %v66 = vld [vmem:[%s2 + $0x60] sm:$0xf]
  %v67 = vld [vmem:[%s2 + $0x68] sm:$0xf]
  %v68 = vld [vmem:[%s2 + $0x70] sm:$0xf]
  %v69 = vld [vmem:[%s2 + $0x78] sm:$0xf]
  %v70 = vlaneseq
  %v71 = vshrl.u32 %v70, 7
  %v72 = vsub.s32 0, %v71
  %v73 = vrot.slane %v20, %v72
  %v106 = vunpack.c.l.b16 %v22
  %v107 = vunpack.c.l.b16 %v23
  %v108 = vunpack.c.l.b16 %v24
  %v109 = vunpack.c.l.b16 %v25
  %v110 = vunpack.c.l.b16 %v26
  %v111 = vunpack.c.l.b16 %v27
  %v112 = vunpack.c.l.b16 %v28
  %v113 = vunpack.c.l.b16 %v29
  %v114 = vunpack.c.l.b16 %v30
  %v115 = vunpack.c.l.b16 %v31
  %v116 = vunpack.c.l.b16 %v32
  %v117 = vunpack.c.l.b16 %v33
  %v118 = vunpack.c.l.b16 %v34
  %v119 = vunpack.c.l.b16 %v35
  %v120 = vunpack.c.l.b16 %v36
  %v121 = vunpack.c.l.b16 %v37
  %v122 = vunpack.c.l.b16 %v38
  %v123 = vunpack.c.l.b16 %v39
  %v124 = vunpack.c.l.b16 %v40
  %v125 = vunpack.c.l.b16 %v41
  %v126 = vunpack.c.l.b16 %v42
  %v127 = vunpack.c.l.b16 %v43
  %v128 = vunpack.c.l.b16 %v44
  %v129 = vunpack.c.l.b16 %v45
  %v130 = vunpack.c.l.b16 %v46
  %v131 = vunpack.c.l.b16 %v47
  %v132 = vunpack.c.l.b16 %v48
  %v133 = vunpack.c.l.b16 %v49
  %v134 = vunpack.c.l.b16 %v50
  %v135 = vunpack.c.l.b16 %v51
  %v136 = vunpack.c.l.b16 %v52
  %v137 = vunpack.c.l.b16 %v53
  %v138 = vpack.c.b16 %v107, %v106
  %v139 = vpack.c.b16 %v109, %v108
  %v140 = vpack.c.b16 %v111, %v110
  %v141 = vpack.c.b16 %v113, %v112
  %v142 = vpack.c.b16 %v115, %v114
  %v143 = vpack.c.b16 %v117, %v116
  %v144 = vpack.c.b16 %v119, %v118
  %v145 = vpack.c.b16 %v121, %v120
  %v146 = vpack.c.b16 %v123, %v122
  %v147 = vpack.c.b16 %v125, %v124
  %v148 = vpack.c.b16 %v127, %v126
  %v149 = vpack.c.b16 %v129, %v128
  %v150 = vpack.c.b16 %v131, %v130
  %v151 = vpack.c.b16 %v133, %v132
  %v152 = vpack.c.b16 %v135, %v134
  %v153 = vpack.c.b16 %v137, %v136
  %v186 = vunpack.c.l.b16 %v54
  %v187 = vunpack.c.l.b16 %v55
  %v188 = vunpack.c.l.b16 %v56
  %v189 = vunpack.c.l.b16 %v57
  %v190 = vunpack.c.l.b16 %v58
  %v191 = vunpack.c.l.b16 %v59
  %v192 = vunpack.c.l.b16 %v60
  %v193 = vunpack.c.l.b16 %v61
  %v194 = vunpack.c.l.b16 %v62
  %v195 = vunpack.c.l.b16 %v63
  %v196 = vunpack.c.l.b16 %v64
  %v197 = vunpack.c.l.b16 %v65
  %v198 = vunpack.c.l.b16 %v66
  %v199 = vunpack.c.l.b16 %v67
  %v200 = vunpack.c.l.b16 %v68
  %v201 = vunpack.c.l.b16 %v69
  %v202 = vpack.c.b16 %v187, %v186
  %v203 = vpack.c.b16 %v189, %v188
  %v204 = vpack.c.b16 %v191, %v190
  %v205 = vpack.c.b16 %v193, %v192
  %v206 = vpack.c.b16 %v195, %v194
  %v207 = vpack.c.b16 %v197, %v196
  %v208 = vpack.c.b16 %v199, %v198
  %v209 = vpack.c.b16 %v201, %v200
  %218 = vmatprep.subr.bf16.mxu0 0
  %219 = vmatpush1.bf16.msra.mxu0 %v202
  %220 = vmatprep.subr.bf16.mxu0 0
  %221 = vmatpush1.bf16.msra.mxu0 %v203
  %222 = vmatprep.subr.bf16.mxu0 0
  %223 = vmatpush1.bf16.msra.mxu0 %v204
  %224 = vmatprep.subr.bf16.mxu0 0
  %225 = vmatpush1.bf16.msra.mxu0 %v205
  %226 = vmatprep.subr.bf16.mxu0 0
  %227 = vmatpush1.bf16.msra.mxu0 %v206
  %228 = vmatprep.subr.bf16.mxu0 0
  %229 = vmatpush1.bf16.msra.mxu0 %v207
  %230 = vmatprep.subr.bf16.mxu0 0
  %231 = vmatpush1.bf16.msra.mxu0 %v208
  %232 = vmatprep.subr.bf16.mxu0 0
  %233 = vmatpush1.bf16.msra.mxu0 %v209
  %234 = vmatprep.subr.bf16.mxu0 0
  %235 = vmatpush1.bf16.msra.mxu0 0
  %236 = vmatprep.subr.bf16.mxu0 0
  %237 = vmatpush1.bf16.msra.mxu0 0
  %238 = vmatprep.subr.bf16.mxu0 0
  %239 = vmatpush1.bf16.msra.mxu0 0
  %240 = vmatprep.subr.bf16.mxu0 0
  %241 = vmatpush1.bf16.msra.mxu0 0
  %242 = vmatprep.subr.bf16.mxu0 0
  %243 = vmatpush1.bf16.msra.mxu0 0
  %244 = vmatprep.subr.bf16.mxu0 0
  %245 = vmatpush1.bf16.msra.mxu0 0
  %246 = vmatprep.subr.bf16.mxu0 0
  %247 = vmatpush1.bf16.msra.mxu0 0
  %248 = vmatprep.subr.bf16.mxu0 0
  %249 = vmatpush1.bf16.msra.mxu0 0
  %250 = vmatprep.mubr.bf16.mxu0 0
  %251 = vmatmul.mubr.bf16.gmra.mrb[0].mxu0 %v138
  %v252 = vpop.f32.mrb[0].mxu0
  %v253 = vadd.f32 %v73, %v252
  %v254 = vpop.f32.mrb[0].mxu0
  %v255 = vpop.f32.mrb[0].mxu0
  %v256 = vadd.f32 %v73, %v255
  %v257 = vpop.f32.mrb[0].mxu0
  %258 = vmatprep.mubr.bf16.mxu0 0
  %259 = vmatmul.mubr.bf16.gmra.mrb[0].mxu0 %v139
  %v260 = vpop.f32.mrb[0].mxu0
  %v261 = vadd.f32 %v73, %v260
  %v262 = vpop.f32.mrb[0].mxu0
  %v263 = vpop.f32.mrb[0].mxu0
  %v264 = vadd.f32 %v73, %v263
  %v265 = vpop.f32.mrb[0].mxu0
  %266 = vmatprep.mubr.bf16.mxu0 0
  %267 = vmatmul.mubr.bf16.gmra.mrb[0].mxu0 %v140
  %v268 = vpop.f32.mrb[0].mxu0
  %v269 = vadd.f32 %v73, %v268
  %v270 = vpop.f32.mrb[0].mxu0
  %v271 = vpop.f32.mrb[0].mxu0
  %v272 = vadd.f32 %v73, %v271
  %v273 = vpop.f32.mrb[0].mxu0
  %274 = vmatprep.mubr.bf16.mxu0 0
  %275 = vmatmul.mubr.bf16.gmra.mrb[0].mxu0 %v141
  %v276 = vpop.f32.mrb[0].mxu0
  %v277 = vadd.f32 %v73, %v276
  %v278 = vpop.f32.mrb[0].mxu0
  %v279 = vpop.f32.mrb[0].mxu0
  %v280 = vadd.f32 %v73, %v279
  %v281 = vpop.f32.mrb[0].mxu0
  %282 = vmatprep.mubr.bf16.mxu0 0
  %283 = vmatmul.mubr.bf16.gmra.mrb[0].mxu0 %v142
  %v284 = vpop.f32.mrb[0].mxu0
  %v285 = vadd.f32 %v73, %v284
  %v286 = vpop.f32.mrb[0].mxu0
  %v287 = vpop.f32.mrb[0].mxu0
  %v288 = vadd.f32 %v73, %v287
  %v289 = vpop.f32.mrb[0].mxu0
  %290 = vmatprep.mubr.bf16.mxu0 0
  %291 = vmatmul.mubr.bf16.gmra.mrb[0].mxu0 %v143
  %v292 = vpop.f32.mrb[0].mxu0
  %v293 = vadd.f32 %v73, %v292
  %v294 = vpop.f32.mrb[0].mxu0
  %v295 = vpop.f32.mrb[0].mxu0
  %v296 = vadd.f32 %v73, %v295
  %v297 = vpop.f32.mrb[0].mxu0
  %298 = vmatprep.mubr.bf16.mxu0 0
  %299 = vmatmul.mubr.bf16.gmra.mrb[0].mxu0 %v144
  %v300 = vpop.f32.mrb[0].mxu0
  %v301 = vadd.f32 %v73, %v300
  %v302 = vpop.f32.mrb[0].mxu0
  %v303 = vpop.f32.mrb[0].mxu0
  %v304 = vadd.f32 %v73, %v303
  %v305 = vpop.f32.mrb[0].mxu0
  %306 = vmatprep.mubr.bf16.mxu0 0
  %307 = vmatmul.mubr.bf16.gmra.mrb[0].mxu0 %v145
  %v308 = vpop.f32.mrb[0].mxu0
  %v309 = vadd.f32 %v73, %v308
  %v310 = vpop.f32.mrb[0].mxu0
  %v311 = vpop.f32.mrb[0].mxu0
  %v312 = vadd.f32 %v73, %v311
  %v313 = vpop.f32.mrb[0].mxu0
  %314 = vmatprep.mubr.bf16.mxu0 0
  %315 = vmatmul.mubr.bf16.gmra.mrb[0].mxu0 %v146
  %v316 = vpop.f32.mrb[0].mxu0
  %v317 = vadd.f32 %v73, %v316
  %v318 = vpop.f32.mrb[0].mxu0
  %v319 = vpop.f32.mrb[0].mxu0
  %v320 = vadd.f32 %v73, %v319
  %v321 = vpop.f32.mrb[0].mxu0
  %322 = vmatprep.mubr.bf16.mxu0 0
  %323 = vmatmul.mubr.bf16.gmra.mrb[0].mxu0 %v147
  %v324 = vpop.f32.mrb[0].mxu0
  %v325 = vadd.f32 %v73, %v324
  %v326 = vpop.f32.mrb[0].mxu0
  %v327 = vpop.f32.mrb[0].mxu0
  %v328 = vadd.f32 %v73, %v327
  %v329 = vpop.f32.mrb[0].mxu0
  %330 = vmatprep.mubr.bf16.mxu0 0
  %331 = vmatmul.mubr.bf16.gmra.mrb[0].mxu0 %v148
  %v332 = vpop.f32.mrb[0].mxu0
  %v333 = vadd.f32 %v73, %v332
  %v334 = vpop.f32.mrb[0].mxu0
  %v335 = vpop.f32.mrb[0].mxu0
  %v336 = vadd.f32 %v73, %v335
  %v337 = vpop.f32.mrb[0].mxu0
  %338 = vmatprep.mubr.bf16.mxu0 0
  %339 = vmatmul.mubr.bf16.gmra.mrb[0].mxu0 %v149
  %v340 = vpop.f32.mrb[0].mxu0
  %v341 = vadd.f32 %v73, %v340
  %v342 = vpop.f32.mrb[0].mxu0
  %v343 = vpop.f32.mrb[0].mxu0
  %v344 = vadd.f32 %v73, %v343
  %v345 = vpop.f32.mrb[0].mxu0
  %346 = vmatprep.mubr.bf16.mxu0 0
  %347 = vmatmul.mubr.bf16.gmra.mrb[0].mxu0 %v150
  %v348 = vpop.f32.mrb[0].mxu0
  %v349 = vadd.f32 %v73, %v348
  %v350 = vpop.f32.mrb[0].mxu0
  %v351 = vpop.f32.mrb[0].mxu0
  %v352 = vadd.f32 %v73, %v351
  %v353 = vpop.f32.mrb[0].mxu0
  %354 = vmatprep.mubr.bf16.mxu0 0
  %355 = vmatmul.mubr.bf16.gmra.mrb[0].mxu0 %v151
  %v356 = vpop.f32.mrb[0].mxu0
  %v357 = vadd.f32 %v73, %v356
  %v358 = vpop.f32.mrb[0].mxu0
  %v359 = vpop.f32.mrb[0].mxu0
  %v360 = vadd.f32 %v73, %v359
  %v361 = vpop.f32.mrb[0].mxu0
  %362 = vmatprep.mubr.bf16.mxu0 0
  %363 = vmatmul.mubr.bf16.gmra.mrb[0].mxu0 %v152
  %v364 = vpop.f32.mrb[0].mxu0
  %v365 = vadd.f32 %v73, %v364
  %v366 = vpop.f32.mrb[0].mxu0
  %v367 = vpop.f32.mrb[0].mxu0
  %v368 = vadd.f32 %v73, %v367
  %v369 = vpop.f32.mrb[0].mxu0
  %370 = vmatprep.mubr.bf16.mxu0 0
  %371 = vmatmul.mubr.bf16.gmra.mrb[0].mxu0 %v153
  %v372 = vpop.f32.mrb[0].mxu0
  %v373 = vadd.f32 %v73, %v372
  %v374 = vpop.f32.mrb[0].mxu0
  %v375 = vpop.f32.mrb[0].mxu0
  %v376 = vadd.f32 %v73, %v375
  %v377 = vpop.f32.mrb[0].mxu0
  %378 = vdwg.mxu0
  %v379 = vtanh.pop %v253
  %v380 = vtanh.pop %v256
  %v381 = vtanh.pop %v261
  %v382 = vtanh.pop %v264
  %v383 = vtanh.pop %v269
  %v384 = vtanh.pop %v272
  %v385 = vtanh.pop %v277
  %v386 = vtanh.pop %v280
  %v387 = vtanh.pop %v285
  %v388 = vtanh.pop %v288
  %v389 = vtanh.pop %v293
  %v390 = vtanh.pop %v296
  %v391 = vtanh.pop %v301
  %v392 = vtanh.pop %v304
  %v393 = vtanh.pop %v309
  %v394 = vtanh.pop %v312
  %v395 = vtanh.pop %v317
  %v396 = vtanh.pop %v320
  %v397 = vtanh.pop %v325
  %v398 = vtanh.pop %v328
  %v399 = vtanh.pop %v333
  %v400 = vtanh.pop %v336
  %v401 = vtanh.pop %v341
  %v402 = vtanh.pop %v344
  %v403 = vtanh.pop %v349
  %v404 = vtanh.pop %v352
  %v405 = vtanh.pop %v357
  %v406 = vtanh.pop %v360
  %v407 = vtanh.pop %v365
  %v408 = vtanh.pop %v368
  %v409 = vtanh.pop %v373
  %v410 = vtanh.pop %v376
  %v411 = vpack.c.bf16 %v380, %v379
  %v412 = vpack.c.bf16 %v382, %v381
  %v413 = vpack.c.bf16 %v384, %v383
  %v414 = vpack.c.bf16 %v386, %v385
  %v415 = vpack.c.bf16 %v388, %v387
  %v416 = vpack.c.bf16 %v390, %v389
  %v417 = vpack.c.bf16 %v392, %v391
  %v418 = vpack.c.bf16 %v394, %v393
  %v419 = vpack.c.bf16 %v396, %v395
  %v420 = vpack.c.bf16 %v398, %v397
  %v421 = vpack.c.bf16 %v400, %v399
  %v422 = vpack.c.bf16 %v402, %v401
  %v423 = vpack.c.bf16 %v404, %v403
  %v424 = vpack.c.bf16 %v406, %v405
  %v425 = vpack.c.bf16 %v408, %v407
  %v426 = vpack.c.bf16 %v410, %v409
  %v427 = vld [vmem:[%s2 + $0x80] sm:$0xf]
  %v428 = vld [vmem:[%s2 + $0x88] sm:$0xf]
  %v429 = vld [vmem:[%s2 + $0x90] sm:$0xf]
  %v430 = vld [vmem:[%s2 + $0x98] sm:$0xf]
  %v431 = vld [vmem:[%s2 + $0xa0] sm:$0xf]
  %v432 = vld [vmem:[%s2 + $0xa8] sm:$0xf]
  %v433 = vld [vmem:[%s2 + $0xb0] sm:$0xf]
  %v434 = vld [vmem:[%s2 + $0xb8] sm:$0xf]
  %v435 = vlaneseq
  %v436 = vshrl.u32 %v435, 7
  %v437 = vsub.s32 1, %v436
  %v438 = vrot.slane %v20, %v437
  %v447 = vunpack.c.l.b16 %v427
  %v448 = vunpack.c.l.b16 %v428
  %v449 = vunpack.c.l.b16 %v429
  %v450 = vunpack.c.l.b16 %v430
  %v451 = vunpack.c.l.b16 %v431
  %v452 = vunpack.c.l.b16 %v432
  %v453 = vunpack.c.l.b16 %v433
  %v454 = vunpack.c.l.b16 %v434
  %v455 = vpack.c.b16 %v448, %v447
  %v456 = vpack.c.b16 %v450, %v449
  %v457 = vpack.c.b16 %v452, %v451
  %v458 = vpack.c.b16 %v454, %v453
  %vm463 = vcmask 523264
  %v465 = vsel %vm463, %v411, 0
  %v468 = vsel %vm463, %v412, 0
  %v471 = vsel %vm463, %v413, 0
  %v474 = vsel %vm463, %v414, 0
  %v477 = vsel %vm463, %v415, 0
  %v480 = vsel %vm463, %v416, 0
  %v483 = vsel %vm463, %v417, 0
  %v486 = vsel %vm463, %v418, 0
  %v489 = vsel %vm463, %v419, 0
  %v492 = vsel %vm463, %v420, 0
  %v495 = vsel %vm463, %v421, 0
  %v498 = vsel %vm463, %v422, 0
  %v501 = vsel %vm463, %v423, 0
  %v504 = vsel %vm463, %v424, 0
  %v507 = vsel %vm463, %v425, 0
  %v510 = vsel %vm463, %v426, 0
  %512 = vmatprep.subr.bf16.mxu0 0
  %513 = vmatpush1.bf16.msra.mxu0 %v455
  %514 = vmatprep.subr.bf16.mxu0 0
  %515 = vmatpush1.bf16.msra.mxu0 %v456
  %516 = vmatprep.subr.bf16.mxu0 0
  %517 = vmatpush1.bf16.msra.mxu0 %v457
  %518 = vmatprep.subr.bf16.mxu0 0
  %519 = vmatpush1.bf16.msra.mxu0 %v458
  %520 = vmatprep.subr.bf16.mxu0 0
  %521 = vmatpush1.bf16.msra.mxu0 0
  %522 = vmatprep.subr.bf16.mxu0 0
  %523 = vmatpush1.bf16.msra.mxu0 0
  %524 = vmatprep.subr.bf16.mxu0 0
  %525 = vmatpush1.bf16.msra.mxu0 0
  %526 = vmatprep.subr.bf16.mxu0 0
  %527 = vmatpush1.bf16.msra.mxu0 0
  %528 = vmatprep.subr.bf16.mxu0 0
  %529 = vmatpush1.bf16.msra.mxu0 0
  %530 = vmatprep.subr.bf16.mxu0 0
  %531 = vmatpush1.bf16.msra.mxu0 0
  %532 = vmatprep.subr.bf16.mxu0 0
  %533 = vmatpush1.bf16.msra.mxu0 0
  %534 = vmatprep.subr.bf16.mxu0 0
  %535 = vmatpush1.bf16.msra.mxu0 0
  %536 = vmatprep.subr.bf16.mxu0 0
  %537 = vmatpush1.bf16.msra.mxu0 0
  %538 = vmatprep.subr.bf16.mxu0 0
  %539 = vmatpush1.bf16.msra.mxu0 0
  %540 = vmatprep.subr.bf16.mxu0 0
  %541 = vmatpush1.bf16.msra.mxu0 0
  %542 = vmatprep.subr.bf16.mxu0 0
  %543 = vmatpush1.bf16.msra.mxu0 0
  %544 = vmatprep.mubr.bf16.mxu0 0
  %545 = vmatmul.mubr.bf16.gmra.mrb[0].mxu0 %v465
  %v546 = vpop.f32.mrb[0].mxu0
  %v547 = vadd.f32 %v438, %v546
  %v548 = vpop.f32.mrb[0].mxu0
  %v549 = vpop.f32.mrb[0].mxu0
  %v550 = vadd.f32 %v438, %v549
  %v551 = vpop.f32.mrb[0].mxu0
  %552 = vmatprep.mubr.bf16.mxu0 0
  %553 = vmatmul.mubr.bf16.gmra.mrb[0].mxu0 %v468
  %v554 = vpop.f32.mrb[0].mxu0
  %v555 = vadd.f32 %v438, %v554
  %v556 = vpop.f32.mrb[0].mxu0
  %v557 = vpop.f32.mrb[0].mxu0
  %v558 = vadd.f32 %v438, %v557
  %v559 = vpop.f32.mrb[0].mxu0
  %560 = vmatprep.mubr.bf16.mxu0 0
  %561 = vmatmul.mubr.bf16.gmra.mrb[0].mxu0 %v471
  %v562 = vpop.f32.mrb[0].mxu0
  %v563 = vadd.f32 %v438, %v562
  %v564 = vpop.f32.mrb[0].mxu0
  %v565 = vpop.f32.mrb[0].mxu0
  %v566 = vadd.f32 %v438, %v565
  %v567 = vpop.f32.mrb[0].mxu0
  %568 = vmatprep.mubr.bf16.mxu0 0
  %569 = vmatmul.mubr.bf16.gmra.mrb[0].mxu0 %v474
  %v570 = vpop.f32.mrb[0].mxu0
  %v571 = vadd.f32 %v438, %v570
  %v572 = vpop.f32.mrb[0].mxu0
  %v573 = vpop.f32.mrb[0].mxu0
  %v574 = vadd.f32 %v438, %v573
  %v575 = vpop.f32.mrb[0].mxu0
  %576 = vmatprep.mubr.bf16.mxu0 0
  %577 = vmatmul.mubr.bf16.gmra.mrb[0].mxu0 %v477
  %v578 = vpop.f32.mrb[0].mxu0
  %v579 = vadd.f32 %v438, %v578
  %v580 = vpop.f32.mrb[0].mxu0
  %v581 = vpop.f32.mrb[0].mxu0
  %v582 = vadd.f32 %v438, %v581
  %v583 = vpop.f32.mrb[0].mxu0
  %584 = vmatprep.mubr.bf16.mxu0 0
  %585 = vmatmul.mubr.bf16.gmra.mrb[0].mxu0 %v480
  %v586 = vpop.f32.mrb[0].mxu0
  %v587 = vadd.f32 %v438, %v586
  %v588 = vpop.f32.mrb[0].mxu0
  %v589 = vpop.f32.mrb[0].mxu0
  %v590 = vadd.f32 %v438, %v589
  %v591 = vpop.f32.mrb[0].mxu0
  %592 = vmatprep.mubr.bf16.mxu0 0
  %593 = vmatmul.mubr.bf16.gmra.mrb[0].mxu0 %v483
  %v594 = vpop.f32.mrb[0].mxu0
  %v595 = vadd.f32 %v438, %v594
  %v596 = vpop.f32.mrb[0].mxu0
  %v597 = vpop.f32.mrb[0].mxu0
  %v598 = vadd.f32 %v438, %v597
  %v599 = vpop.f32.mrb[0].mxu0
  %600 = vmatprep.mubr.bf16.mxu0 0
  %601 = vmatmul.mubr.bf16.gmra.mrb[0].mxu0 %v486
  %v602 = vpop.f32.mrb[0].mxu0
  %v603 = vadd.f32 %v438, %v602
  %v604 = vpop.f32.mrb[0].mxu0
  %v605 = vpop.f32.mrb[0].mxu0
  %v606 = vadd.f32 %v438, %v605
  %v607 = vpop.f32.mrb[0].mxu0
  %608 = vmatprep.mubr.bf16.mxu0 0
  %609 = vmatmul.mubr.bf16.gmra.mrb[0].mxu0 %v489
  %v610 = vpop.f32.mrb[0].mxu0
  %v611 = vadd.f32 %v438, %v610
  %v612 = vpop.f32.mrb[0].mxu0
  %v613 = vpop.f32.mrb[0].mxu0
  %v614 = vadd.f32 %v438, %v613
  %v615 = vpop.f32.mrb[0].mxu0
  %616 = vmatprep.mubr.bf16.mxu0 0
  %617 = vmatmul.mubr.bf16.gmra.mrb[0].mxu0 %v492
  %v618 = vpop.f32.mrb[0].mxu0
  %v619 = vadd.f32 %v438, %v618
  %v620 = vpop.f32.mrb[0].mxu0
  %v621 = vpop.f32.mrb[0].mxu0
  %v622 = vadd.f32 %v438, %v621
  %v623 = vpop.f32.mrb[0].mxu0
  %624 = vmatprep.mubr.bf16.mxu0 0
  %625 = vmatmul.mubr.bf16.gmra.mrb[0].mxu0 %v495
  %v626 = vpop.f32.mrb[0].mxu0
  %v627 = vadd.f32 %v438, %v626
  %v628 = vpop.f32.mrb[0].mxu0
  %v629 = vpop.f32.mrb[0].mxu0
  %v630 = vadd.f32 %v438, %v629
  %v631 = vpop.f32.mrb[0].mxu0
  %632 = vmatprep.mubr.bf16.mxu0 0
  %633 = vmatmul.mubr.bf16.gmra.mrb[0].mxu0 %v498
  %v634 = vpop.f32.mrb[0].mxu0
  %v635 = vadd.f32 %v438, %v634
  %v636 = vpop.f32.mrb[0].mxu0
  %v637 = vpop.f32.mrb[0].mxu0
  %v638 = vadd.f32 %v438, %v637
  %v639 = vpop.f32.mrb[0].mxu0
  %640 = vmatprep.mubr.bf16.mxu0 0
  %641 = vmatmul.mubr.bf16.gmra.mrb[0].mxu0 %v501
  %v642 = vpop.f32.mrb[0].mxu0
  %v643 = vadd.f32 %v438, %v642
  %v644 = vpop.f32.mrb[0].mxu0
  %v645 = vpop.f32.mrb[0].mxu0
  %v646 = vadd.f32 %v438, %v645
  %v647 = vpop.f32.mrb[0].mxu0
  %648 = vmatprep.mubr.bf16.mxu0 0
  %649 = vmatmul.mubr.bf16.gmra.mrb[0].mxu0 %v504
  %v650 = vpop.f32.mrb[0].mxu0
  %v651 = vadd.f32 %v438, %v650
  %v652 = vpop.f32.mrb[0].mxu0
  %v653 = vpop.f32.mrb[0].mxu0
  %v654 = vadd.f32 %v438, %v653
  %v655 = vpop.f32.mrb[0].mxu0
  %656 = vmatprep.mubr.bf16.mxu0 0
  %657 = vmatmul.mubr.bf16.gmra.mrb[0].mxu0 %v507
  %v658 = vpop.f32.mrb[0].mxu0
  %v659 = vadd.f32 %v438, %v658
  %v660 = vpop.f32.mrb[0].mxu0
  %v661 = vpop.f32.mrb[0].mxu0
  %v662 = vadd.f32 %v438, %v661
  %v663 = vpop.f32.mrb[0].mxu0
  %664 = vmatprep.mubr.bf16.mxu0 0
  %665 = vmatmul.mubr.bf16.gmra.mrb[0].mxu0 %v510
  %v666 = vpop.f32.mrb[0].mxu0
  %v667 = vadd.f32 %v438, %v666
  %v668 = vpop.f32.mrb[0].mxu0
  %v669 = vpop.f32.mrb[0].mxu0
  %v670 = vadd.f32 %v438, %v669
  %v671 = vpop.f32.mrb[0].mxu0
  %672 = vdwg.mxu0
  %v673 = vmul.f32 %v547, 0.5
  %v674 = vmul.f32 %v550, 0.5
  %v675 = vmul.f32 %v555, 0.5
  %v676 = vmul.f32 %v558, 0.5
  %v677 = vmul.f32 %v563, 0.5
  %v678 = vmul.f32 %v566, 0.5
  %v679 = vmul.f32 %v571, 0.5
  %v680 = vmul.f32 %v574, 0.5
  %v681 = vmul.f32 %v579, 0.5
  %v682 = vmul.f32 %v582, 0.5
  %v683 = vmul.f32 %v587, 0.5
  %v684 = vmul.f32 %v590, 0.5
  %v685 = vmul.f32 %v595, 0.5
  %v686 = vmul.f32 %v598, 0.5
  %v687 = vmul.f32 %v603, 0.5
  %v688 = vmul.f32 %v606, 0.5
  %v689 = vmul.f32 %v611, 0.5
  %v690 = vmul.f32 %v614, 0.5
  %v691 = vmul.f32 %v619, 0.5
  %v692 = vmul.f32 %v622, 0.5
  %v693 = vmul.f32 %v627, 0.5
  %v694 = vmul.f32 %v630, 0.5
  %v695 = vmul.f32 %v635, 0.5
  %v696 = vmul.f32 %v638, 0.5
  %v697 = vmul.f32 %v643, 0.5
  %v698 = vmul.f32 %v646, 0.5
  %v699 = vmul.f32 %v651, 0.5
  %v700 = vmul.f32 %v654, 0.5
  %v701 = vmul.f32 %v659, 0.5
  %v702 = vmul.f32 %v662, 0.5
  %v703 = vmul.f32 %v667, 0.5
  %v704 = vmul.f32 %v670, 0.5
  %v705 = vmul.f32 %v673, 1.442695
  %v706 = vpow.pop %v705
  %v707 = vmul.f32 %v674, 1.442695
  %v708 = vpow.pop %v707
  %v709 = vmul.f32 %v675, 1.442695
  %v710 = vpow.pop %v709
  %v711 = vmul.f32 %v676, 1.442695
  %v712 = vpow.pop %v711
  %v713 = vmul.f32 %v677, 1.442695
  %v714 = vpow.pop %v713
  %v715 = vmul.f32 %v678, 1.442695
  %v716 = vpow.pop %v715
  %v717 = vmul.f32 %v679, 1.442695
  %v718 = vpow.pop %v717
  %v719 = vmul.f32 %v680, 1.442695
  %v720 = vpow.pop %v719
  %v721 = vmul.f32 %v681, 1.442695
  %v722 = vpow.pop %v721
  %v723 = vmul.f32 %v682, 1.442695
  %v724 = vpow.pop %v723
  %v725 = vmul.f32 %v683, 1.442695
  %v726 = vpow.pop %v725
  %v727 = vmul.f32 %v684, 1.442695
  %v728 = vpow.pop %v727
  %v729 = vmul.f32 %v685, 1.442695
  %v730 = vpow.pop %v729
  %v731 = vmul.f32 %v686, 1.442695
  %v732 = vpow.pop %v731
  %v733 = vmul.f32 %v687, 1.442695
  %v734 = vpow.pop %v733
  %v735 = vmul.f32 %v688, 1.442695
  %v736 = vpow.pop %v735
  %v737 = vmul.f32 %v689, 1.442695
  %v738 = vpow.pop %v737
  %v739 = vmul.f32 %v690, 1.442695
  %v740 = vpow.pop %v739
  %v741 = vmul.f32 %v691, 1.442695
  %v742 = vpow.pop %v741
  %v743 = vmul.f32 %v692, 1.442695
  %v744 = vpow.pop %v743
  %v745 = vmul.f32 %v693, 1.442695
  %v746 = vpow.pop %v745
  %v747 = vmul.f32 %v694, 1.442695
  %v748 = vpow.pop %v747
  %v749 = vmul.f32 %v695, 1.442695
  %v750 = vpow.pop %v749
  %v751 = vmul.f32 %v696, 1.442695
  %v752 = vpow.pop %v751
  %v753 = vmul.f32 %v697, 1.442695
  %v754 = vpow.pop %v753
  %v755 = vmul.f32 %v698, 1.442695
  %v756 = vpow.pop %v755
  %v757 = vmul.f32 %v699, 1.442695
  %v758 = vpow.pop %v757
  %v759 = vmul.f32 %v700, 1.442695
  %v760 = vpow.pop %v759
  %v761 = vmul.f32 %v701, 1.442695
  %v762 = vpow.pop %v761
  %v763 = vmul.f32 %v702, 1.442695
  %v764 = vpow.pop %v763
  %v765 = vmul.f32 %v703, 1.442695
  %v766 = vpow.pop %v765
  %v767 = vmul.f32 %v704, 1.442695
  %v768 = vpow.pop %v767
  %v769 = vld [vmem:[%s1] sm:$0xff]
  %v770 = vld [vmem:[%s1 + $0x8] sm:$0xff]
  %v771 = vld [vmem:[%s1 + $0x10] sm:$0xff]
  %v772 = vld [vmem:[%s1 + $0x18] sm:$0xff]
  %v773 = vld [vmem:[%s1 + $0x20] sm:$0xff]
  %v774 = vld [vmem:[%s1 + $0x28] sm:$0xff]
  %v775 = vld [vmem:[%s1 + $0x30] sm:$0xff]
  %v776 = vld [vmem:[%s1 + $0x38] sm:$0xff]
  %v777 = vld [vmem:[%s1 + $0x40] sm:$0xff]
  %v778 = vld [vmem:[%s1 + $0x48] sm:$0xff]
  %v779 = vld [vmem:[%s1 + $0x50] sm:$0xff]
  %v780 = vld [vmem:[%s1 + $0x58] sm:$0xff]
  %v781 = vld [vmem:[%s1 + $0x60] sm:$0xff]
  %v782 = vld [vmem:[%s1 + $0x68] sm:$0xff]
  %v783 = vld [vmem:[%s1 + $0x70] sm:$0xff]
  %v784 = vld [vmem:[%s1 + $0x78] sm:$0xff]
  %v785 = vld [vmem:[%s1 + $0x80] sm:$0xff]
  %v786 = vld [vmem:[%s1 + $0x88] sm:$0xff]
  %v787 = vld [vmem:[%s1 + $0x90] sm:$0xff]
  %v788 = vld [vmem:[%s1 + $0x98] sm:$0xff]
  %v789 = vld [vmem:[%s1 + $0xa0] sm:$0xff]
  %v790 = vld [vmem:[%s1 + $0xa8] sm:$0xff]
  %v791 = vld [vmem:[%s1 + $0xb0] sm:$0xff]
  %v792 = vld [vmem:[%s1 + $0xb8] sm:$0xff]
  %v793 = vld [vmem:[%s1 + $0xc0] sm:$0xff]
  %v794 = vld [vmem:[%s1 + $0xc8] sm:$0xff]
  %v795 = vld [vmem:[%s1 + $0xd0] sm:$0xff]
  %v796 = vld [vmem:[%s1 + $0xd8] sm:$0xff]
  %v797 = vld [vmem:[%s1 + $0xe0] sm:$0xff]
  %v798 = vld [vmem:[%s1 + $0xe8] sm:$0xff]
  %v799 = vld [vmem:[%s1 + $0xf0] sm:$0xff]
  %v800 = vld [vmem:[%s1 + $0xf8] sm:$0xff]
  %v801 = vmul.f32 %v769, 0.01
  %v802 = vmul.f32 %v770, 0.01
  %v803 = vmul.f32 %v771, 0.01
  %v804 = vmul.f32 %v772, 0.01
  %v805 = vmul.f32 %v773, 0.01
  %v806 = vmul.f32 %v774, 0.01
  %v807 = vmul.f32 %v775, 0.01
  %v808 = vmul.f32 %v776, 0.01
  %v809 = vmul.f32 %v777, 0.01
  %v810 = vmul.f32 %v778, 0.01
  %v811 = vmul.f32 %v779, 0.01
  %v812 = vmul.f32 %v780, 0.01
  %v813 = vmul.f32 %v781, 0.01
  %v814 = vmul.f32 %v782, 0.01
  %v815 = vmul.f32 %v783, 0.01
  %v816 = vmul.f32 %v784, 0.01
  %v817 = vmul.f32 %v785, 0.01
  %v818 = vmul.f32 %v786, 0.01
  %v819 = vmul.f32 %v787, 0.01
  %v820 = vmul.f32 %v788, 0.01
  %v821 = vmul.f32 %v789, 0.01
  %v822 = vmul.f32 %v790, 0.01
  %v823 = vmul.f32 %v791, 0.01
  %v824 = vmul.f32 %v792, 0.01
  %v825 = vmul.f32 %v793, 0.01
  %v826 = vmul.f32 %v794, 0.01
  %v827 = vmul.f32 %v795, 0.01
  %v828 = vmul.f32 %v796, 0.01
  %v829 = vmul.f32 %v797, 0.01
  %v830 = vmul.f32 %v798, 0.01
  %v831 = vmul.f32 %v799, 0.01
  %v832 = vmul.f32 %v800, 0.01
  %865 = vrot.lane.b32.xlu0 %v706, 96
  %v866 = vpop.permute.xlu0 %865
  %867 = vrot.lane.b32.xlu0 %v708, 96
  %v868 = vpop.permute.xlu0 %867
  %869 = vrot.lane.b32.xlu0 %v710, 96
  %v870 = vpop.permute.xlu0 %869
  %871 = vrot.lane.b32.xlu0 %v712, 96
  %v872 = vpop.permute.xlu0 %871
  %873 = vrot.lane.b32.xlu0 %v714, 96
  %v874 = vpop.permute.xlu0 %873
  %875 = vrot.lane.b32.xlu0 %v716, 96
  %v876 = vpop.permute.xlu0 %875
  %877 = vrot.lane.b32.xlu0 %v718, 96
  %v878 = vpop.permute.xlu0 %877
  %879 = vrot.lane.b32.xlu0 %v720, 96
  %v880 = vpop.permute.xlu0 %879
  %881 = vrot.lane.b32.xlu0 %v722, 96
  %v882 = vpop.permute.xlu0 %881
  %883 = vrot.lane.b32.xlu0 %v724, 96
  %v884 = vpop.permute.xlu0 %883
  %885 = vrot.lane.b32.xlu0 %v726, 96
  %v886 = vpop.permute.xlu0 %885
  %887 = vrot.lane.b32.xlu0 %v728, 96
  %v888 = vpop.permute.xlu0 %887
  %889 = vrot.lane.b32.xlu0 %v730, 96
  %v890 = vpop.permute.xlu0 %889
  %891 = vrot.lane.b32.xlu0 %v732, 96
  %v892 = vpop.permute.xlu0 %891
  %893 = vrot.lane.b32.xlu0 %v734, 96
  %v894 = vpop.permute.xlu0 %893
  %895 = vrot.lane.b32.xlu0 %v736, 96
  %v896 = vpop.permute.xlu0 %895
  %897 = vrot.lane.b32.xlu0 %v738, 96
  %v898 = vpop.permute.xlu0 %897
  %899 = vrot.lane.b32.xlu0 %v740, 96
  %v900 = vpop.permute.xlu0 %899
  %901 = vrot.lane.b32.xlu0 %v742, 96
  %v902 = vpop.permute.xlu0 %901
  %903 = vrot.lane.b32.xlu0 %v744, 96
  %v904 = vpop.permute.xlu0 %903
  %905 = vrot.lane.b32.xlu0 %v746, 96
  %v906 = vpop.permute.xlu0 %905
  %907 = vrot.lane.b32.xlu0 %v748, 96
  %v908 = vpop.permute.xlu0 %907
  %909 = vrot.lane.b32.xlu0 %v750, 96
  %v910 = vpop.permute.xlu0 %909
  %911 = vrot.lane.b32.xlu0 %v752, 96
  %v912 = vpop.permute.xlu0 %911
  %913 = vrot.lane.b32.xlu0 %v754, 96
  %v914 = vpop.permute.xlu0 %913
  %915 = vrot.lane.b32.xlu0 %v756, 96
  %v916 = vpop.permute.xlu0 %915
  %917 = vrot.lane.b32.xlu0 %v758, 96
  %v918 = vpop.permute.xlu0 %917
  %919 = vrot.lane.b32.xlu0 %v760, 96
  %v920 = vpop.permute.xlu0 %919
  %921 = vrot.lane.b32.xlu0 %v762, 96
  %v922 = vpop.permute.xlu0 %921
  %923 = vrot.lane.b32.xlu0 %v764, 96
  %v924 = vpop.permute.xlu0 %923
  %925 = vrot.lane.b32.xlu0 %v766, 96
  %v926 = vpop.permute.xlu0 %925
  %927 = vrot.lane.b32.xlu0 %v768, 96
  %v928 = vpop.permute.xlu0 %927
  %v961 = vmul.f32 %v801, %v866
  %v962 = vmul.f32 %v802, %v868
  %v963 = vmul.f32 %v803, %v870
  %v964 = vmul.f32 %v804, %v872
  %v965 = vmul.f32 %v805, %v874
  %v966 = vmul.f32 %v806, %v876
  %v967 = vmul.f32 %v807, %v878
  %v968 = vmul.f32 %v808, %v880
  %v969 = vmul.f32 %v809, %v882
  %v970 = vmul.f32 %v810, %v884
  %v971 = vmul.f32 %v811, %v886
  %v972 = vmul.f32 %v812, %v888
  %v973 = vmul.f32 %v813, %v890
  %v974 = vmul.f32 %v814, %v892
  %v975 = vmul.f32 %v815, %v894
  %v976 = vmul.f32 %v816, %v896
  %v977 = vmul.f32 %v817, %v898
  %v978 = vmul.f32 %v818, %v900
  %v979 = vmul.f32 %v819, %v902
  %v980 = vmul.f32 %v820, %v904
  %v981 = vmul.f32 %v821, %v906
  %v982 = vmul.f32 %v822, %v908
  %v983 = vmul.f32 %v823, %v910
  %v984 = vmul.f32 %v824, %v912
  %v985 = vmul.f32 %v825, %v914
  %v986 = vmul.f32 %v826, %v916
  %v987 = vmul.f32 %v827, %v918
  %v988 = vmul.f32 %v828, %v920
  %v989 = vmul.f32 %v829, %v922
  %v990 = vmul.f32 %v830, %v924
  %v991 = vmul.f32 %v831, %v926
  %v992 = vmul.f32 %v832, %v928
  %v993 = vadd.f32 %v547, %v961
  %v994 = vadd.f32 %v550, %v962
  %v995 = vadd.f32 %v555, %v963
  %v996 = vadd.f32 %v558, %v964
  %v997 = vadd.f32 %v563, %v965
  %v998 = vadd.f32 %v566, %v966
  %v999 = vadd.f32 %v571, %v967
  %v1000 = vadd.f32 %v574, %v968
  %v1001 = vadd.f32 %v579, %v969
  %v1002 = vadd.f32 %v582, %v970
  %v1003 = vadd.f32 %v587, %v971
  %v1004 = vadd.f32 %v590, %v972
  %v1005 = vadd.f32 %v595, %v973
  %v1006 = vadd.f32 %v598, %v974
  %v1007 = vadd.f32 %v603, %v975
  %v1008 = vadd.f32 %v606, %v976
  %v1009 = vadd.f32 %v611, %v977
  %v1010 = vadd.f32 %v614, %v978
  %v1011 = vadd.f32 %v619, %v979
  %v1012 = vadd.f32 %v622, %v980
  %v1013 = vadd.f32 %v627, %v981
  %v1014 = vadd.f32 %v630, %v982
  %v1015 = vadd.f32 %v635, %v983
  %v1016 = vadd.f32 %v638, %v984
  %v1017 = vadd.f32 %v643, %v985
  %v1018 = vadd.f32 %v646, %v986
  %v1019 = vadd.f32 %v651, %v987
  %v1020 = vadd.f32 %v654, %v988
  %v1021 = vadd.f32 %v659, %v989
  %v1022 = vadd.f32 %v662, %v990
  %v1023 = vadd.f32 %v667, %v991
  %v1024 = vadd.f32 %v670, %v992
  %1057 = vrot.lane.b32.xlu0 %v547, 32
  %v1058 = vpop.permute.xlu0 %1057
  %1059 = vrot.lane.b32.xlu0 %v550, 32
  %v1060 = vpop.permute.xlu0 %1059
  %1061 = vrot.lane.b32.xlu0 %v555, 32
  %v1062 = vpop.permute.xlu0 %1061
  %1063 = vrot.lane.b32.xlu0 %v558, 32
  %v1064 = vpop.permute.xlu0 %1063
  %1065 = vrot.lane.b32.xlu0 %v563, 32
  %v1066 = vpop.permute.xlu0 %1065
  %1067 = vrot.lane.b32.xlu0 %v566, 32
  %v1068 = vpop.permute.xlu0 %1067
  %1069 = vrot.lane.b32.xlu0 %v571, 32
  %v1070 = vpop.permute.xlu0 %1069
  %1071 = vrot.lane.b32.xlu0 %v574, 32
  %v1072 = vpop.permute.xlu0 %1071
  %1073 = vrot.lane.b32.xlu0 %v579, 32
  %v1074 = vpop.permute.xlu0 %1073
  %1075 = vrot.lane.b32.xlu0 %v582, 32
  %v1076 = vpop.permute.xlu0 %1075
  %1077 = vrot.lane.b32.xlu0 %v587, 32
  %v1078 = vpop.permute.xlu0 %1077
  %1079 = vrot.lane.b32.xlu0 %v590, 32
  %v1080 = vpop.permute.xlu0 %1079
  %1081 = vrot.lane.b32.xlu0 %v595, 32
  %v1082 = vpop.permute.xlu0 %1081
  %1083 = vrot.lane.b32.xlu0 %v598, 32
  %v1084 = vpop.permute.xlu0 %1083
  %1085 = vrot.lane.b32.xlu0 %v603, 32
  %v1086 = vpop.permute.xlu0 %1085
  %1087 = vrot.lane.b32.xlu0 %v606, 32
  %v1088 = vpop.permute.xlu0 %1087
  %1089 = vrot.lane.b32.xlu0 %v611, 32
  %v1090 = vpop.permute.xlu0 %1089
  %1091 = vrot.lane.b32.xlu0 %v614, 32
  %v1092 = vpop.permute.xlu0 %1091
  %1093 = vrot.lane.b32.xlu0 %v619, 32
  %v1094 = vpop.permute.xlu0 %1093
  %1095 = vrot.lane.b32.xlu0 %v622, 32
  %v1096 = vpop.permute.xlu0 %1095
  %1097 = vrot.lane.b32.xlu0 %v627, 32
  %v1098 = vpop.permute.xlu0 %1097
  %1099 = vrot.lane.b32.xlu0 %v630, 32
  %v1100 = vpop.permute.xlu0 %1099
  %1101 = vrot.lane.b32.xlu0 %v635, 32
  %v1102 = vpop.permute.xlu0 %1101
  %1103 = vrot.lane.b32.xlu0 %v638, 32
  %v1104 = vpop.permute.xlu0 %1103
  %1105 = vrot.lane.b32.xlu0 %v643, 32
  %v1106 = vpop.permute.xlu0 %1105
  %1107 = vrot.lane.b32.xlu0 %v646, 32
  %v1108 = vpop.permute.xlu0 %1107
  %1109 = vrot.lane.b32.xlu0 %v651, 32
  %v1110 = vpop.permute.xlu0 %1109
  %1111 = vrot.lane.b32.xlu0 %v654, 32
  %v1112 = vpop.permute.xlu0 %1111
  %1113 = vrot.lane.b32.xlu0 %v659, 32
  %v1114 = vpop.permute.xlu0 %1113
  %1115 = vrot.lane.b32.xlu0 %v662, 32
  %v1116 = vpop.permute.xlu0 %1115
  %1117 = vrot.lane.b32.xlu0 %v667, 32
  %v1118 = vpop.permute.xlu0 %1117
  %1119 = vrot.lane.b32.xlu0 %v670, 32
  %v1120 = vpop.permute.xlu0 %1119
  %vm1153 = vcmask 261120
  %v1154 = vsel %vm1153, %v993, %v1058
  %v1155 = vsel %vm1153, %v994, %v1060
  %v1156 = vsel %vm1153, %v995, %v1062
  %v1157 = vsel %vm1153, %v996, %v1064
  %v1158 = vsel %vm1153, %v997, %v1066
  %v1159 = vsel %vm1153, %v998, %v1068
  %v1160 = vsel %vm1153, %v999, %v1070
  %v1161 = vsel %vm1153, %v1000, %v1072
  %v1162 = vsel %vm1153, %v1001, %v1074
  %v1163 = vsel %vm1153, %v1002, %v1076
  %v1164 = vsel %vm1153, %v1003, %v1078
  %v1165 = vsel %vm1153, %v1004, %v1080
  %v1166 = vsel %vm1153, %v1005, %v1082
  %v1167 = vsel %vm1153, %v1006, %v1084
  %v1168 = vsel %vm1153, %v1007, %v1086
  %v1169 = vsel %vm1153, %v1008, %v1088
  %v1170 = vsel %vm1153, %v1009, %v1090
  %v1171 = vsel %vm1153, %v1010, %v1092
  %v1172 = vsel %vm1153, %v1011, %v1094
  %v1173 = vsel %vm1153, %v1012, %v1096
  %v1174 = vsel %vm1153, %v1013, %v1098
  %v1175 = vsel %vm1153, %v1014, %v1100
  %v1176 = vsel %vm1153, %v1015, %v1102
  %v1177 = vsel %vm1153, %v1016, %v1104
  %v1178 = vsel %vm1153, %v1017, %v1106
  %v1179 = vsel %vm1153, %v1018, %v1108
  %v1180 = vsel %vm1153, %v1019, %v1110
  %v1181 = vsel %vm1153, %v1020, %v1112
  %v1182 = vsel %vm1153, %v1021, %v1114
  %v1183 = vsel %vm1153, %v1022, %v1116
  %v1184 = vsel %vm1153, %v1023, %v1118
  %v1185 = vsel %vm1153, %v1024, %v1120
  %v1186 = vpack.c.bf16 %v1155, %v1154
  %v1187 = vpack.c.bf16 %v1157, %v1156
  %v1188 = vpack.c.bf16 %v1159, %v1158
  %v1189 = vpack.c.bf16 %v1161, %v1160
  %v1190 = vpack.c.bf16 %v1163, %v1162
  %v1191 = vpack.c.bf16 %v1165, %v1164
  %v1192 = vpack.c.bf16 %v1167, %v1166
  %v1193 = vpack.c.bf16 %v1169, %v1168
  %v1194 = vpack.c.bf16 %v1171, %v1170
  %v1195 = vpack.c.bf16 %v1173, %v1172
  %v1196 = vpack.c.bf16 %v1175, %v1174
  %v1197 = vpack.c.bf16 %v1177, %v1176
  %v1198 = vpack.c.bf16 %v1179, %v1178
  %v1199 = vpack.c.bf16 %v1181, %v1180
  %v1200 = vpack.c.bf16 %v1183, %v1182
  %v1201 = vpack.c.bf16 %v1185, %v1184
  %v1202 = vld [vmem:[%s2 + $0xc0] sm:$0xf]
  %v1203 = vld [vmem:[%s2 + $0xc8] sm:$0xf]
  %v1204 = vld [vmem:[%s2 + $0xd0] sm:$0xf]
  %v1205 = vld [vmem:[%s2 + $0xd8] sm:$0xf]
  %v1206 = vld [vmem:[%s2 + $0xe0] sm:$0xf]
  %v1207 = vld [vmem:[%s2 + $0xe8] sm:$0xf]
  %v1208 = vld [vmem:[%s2 + $0xf0] sm:$0xf]
  %v1209 = vld [vmem:[%s2 + $0xf8] sm:$0xf]
  %v1210 = vlaneseq
  %v1211 = vshrl.u32 %v1210, 7
  %v1212 = vsub.s32 2, %v1211
  %v1213 = vrot.slane %v20, %v1212
  %v1222 = vunpack.c.l.b16 %v1202
  %v1223 = vunpack.c.l.b16 %v1203
  %v1224 = vunpack.c.l.b16 %v1204
  %v1225 = vunpack.c.l.b16 %v1205
  %v1226 = vunpack.c.l.b16 %v1206
  %v1227 = vunpack.c.l.b16 %v1207
  %v1228 = vunpack.c.l.b16 %v1208
  %v1229 = vunpack.c.l.b16 %v1209
  %v1230 = vpack.c.b16 %v1223, %v1222
  %v1231 = vpack.c.b16 %v1225, %v1224
  %v1232 = vpack.c.b16 %v1227, %v1226
  %v1233 = vpack.c.b16 %v1229, %v1228
  %v1239 = vsel %vm463, %v1186, 0
  %v1242 = vsel %vm463, %v1187, 0
  %v1245 = vsel %vm463, %v1188, 0
  %v1248 = vsel %vm463, %v1189, 0
  %v1251 = vsel %vm463, %v1190, 0
  %v1254 = vsel %vm463, %v1191, 0
  %v1257 = vsel %vm463, %v1192, 0
  %v1260 = vsel %vm463, %v1193, 0
  %v1263 = vsel %vm463, %v1194, 0
  %v1266 = vsel %vm463, %v1195, 0
  %v1269 = vsel %vm463, %v1196, 0
  %v1272 = vsel %vm463, %v1197, 0
  %v1275 = vsel %vm463, %v1198, 0
  %v1278 = vsel %vm463, %v1199, 0
  %v1281 = vsel %vm463, %v1200, 0
  %v1284 = vsel %vm463, %v1201, 0
  %1286 = vmatprep.subr.bf16.mxu0 0
  %1287 = vmatpush1.bf16.msra.mxu0 %v1230
  %1288 = vmatprep.subr.bf16.mxu0 0
  %1289 = vmatpush1.bf16.msra.mxu0 %v1231
  %1290 = vmatprep.subr.bf16.mxu0 0
  %1291 = vmatpush1.bf16.msra.mxu0 %v1232
  %1292 = vmatprep.subr.bf16.mxu0 0
  %1293 = vmatpush1.bf16.msra.mxu0 %v1233
  %1294 = vmatprep.subr.bf16.mxu0 0
  %1295 = vmatpush1.bf16.msra.mxu0 0
  %1296 = vmatprep.subr.bf16.mxu0 0
  %1297 = vmatpush1.bf16.msra.mxu0 0
  %1298 = vmatprep.subr.bf16.mxu0 0
  %1299 = vmatpush1.bf16.msra.mxu0 0
  %1300 = vmatprep.subr.bf16.mxu0 0
  %1301 = vmatpush1.bf16.msra.mxu0 0
  %1302 = vmatprep.subr.bf16.mxu0 0
  %1303 = vmatpush1.bf16.msra.mxu0 0
  %1304 = vmatprep.subr.bf16.mxu0 0
  %1305 = vmatpush1.bf16.msra.mxu0 0
  %1306 = vmatprep.subr.bf16.mxu0 0
  %1307 = vmatpush1.bf16.msra.mxu0 0
  %1308 = vmatprep.subr.bf16.mxu0 0
  %1309 = vmatpush1.bf16.msra.mxu0 0
  %1310 = vmatprep.subr.bf16.mxu0 0
  %1311 = vmatpush1.bf16.msra.mxu0 0
  %1312 = vmatprep.subr.bf16.mxu0 0
  %1313 = vmatpush1.bf16.msra.mxu0 0
  %1314 = vmatprep.subr.bf16.mxu0 0
  %1315 = vmatpush1.bf16.msra.mxu0 0
  %1316 = vmatprep.subr.bf16.mxu0 0
  %1317 = vmatpush1.bf16.msra.mxu0 0
  %1318 = vmatprep.mubr.bf16.mxu0 0
  %1319 = vmatmul.mubr.bf16.gmra.mrb[0].mxu0 %v1239
  %v1320 = vpop.f32.mrb[0].mxu0
  %v1321 = vadd.f32 %v1213, %v1320
  %v1322 = vpop.f32.mrb[0].mxu0
  %v1323 = vpop.f32.mrb[0].mxu0
  %v1324 = vadd.f32 %v1213, %v1323
  %v1325 = vpop.f32.mrb[0].mxu0
  %1326 = vmatprep.mubr.bf16.mxu0 0
  %1327 = vmatmul.mubr.bf16.gmra.mrb[0].mxu0 %v1242
  %v1328 = vpop.f32.mrb[0].mxu0
  %v1329 = vadd.f32 %v1213, %v1328
  %v1330 = vpop.f32.mrb[0].mxu0
  %v1331 = vpop.f32.mrb[0].mxu0
  %v1332 = vadd.f32 %v1213, %v1331
  %v1333 = vpop.f32.mrb[0].mxu0
  %1334 = vmatprep.mubr.bf16.mxu0 0
  %1335 = vmatmul.mubr.bf16.gmra.mrb[0].mxu0 %v1245
  %v1336 = vpop.f32.mrb[0].mxu0
  %v1337 = vadd.f32 %v1213, %v1336
  %v1338 = vpop.f32.mrb[0].mxu0
  %v1339 = vpop.f32.mrb[0].mxu0
  %v1340 = vadd.f32 %v1213, %v1339
  %v1341 = vpop.f32.mrb[0].mxu0
  %1342 = vmatprep.mubr.bf16.mxu0 0
  %1343 = vmatmul.mubr.bf16.gmra.mrb[0].mxu0 %v1248
  %v1344 = vpop.f32.mrb[0].mxu0
  %v1345 = vadd.f32 %v1213, %v1344
  %v1346 = vpop.f32.mrb[0].mxu0
  %v1347 = vpop.f32.mrb[0].mxu0
  %v1348 = vadd.f32 %v1213, %v1347
  %v1349 = vpop.f32.mrb[0].mxu0
  %1350 = vmatprep.mubr.bf16.mxu0 0
  %1351 = vmatmul.mubr.bf16.gmra.mrb[0].mxu0 %v1251
  %v1352 = vpop.f32.mrb[0].mxu0
  %v1353 = vadd.f32 %v1213, %v1352
  %v1354 = vpop.f32.mrb[0].mxu0
  %v1355 = vpop.f32.mrb[0].mxu0
  %v1356 = vadd.f32 %v1213, %v1355
  %v1357 = vpop.f32.mrb[0].mxu0
  %1358 = vmatprep.mubr.bf16.mxu0 0
  %1359 = vmatmul.mubr.bf16.gmra.mrb[0].mxu0 %v1254
  %v1360 = vpop.f32.mrb[0].mxu0
  %v1361 = vadd.f32 %v1213, %v1360
  %v1362 = vpop.f32.mrb[0].mxu0
  %v1363 = vpop.f32.mrb[0].mxu0
  %v1364 = vadd.f32 %v1213, %v1363
  %v1365 = vpop.f32.mrb[0].mxu0
  %1366 = vmatprep.mubr.bf16.mxu0 0
  %1367 = vmatmul.mubr.bf16.gmra.mrb[0].mxu0 %v1257
  %v1368 = vpop.f32.mrb[0].mxu0
  %v1369 = vadd.f32 %v1213, %v1368
  %v1370 = vpop.f32.mrb[0].mxu0
  %v1371 = vpop.f32.mrb[0].mxu0
  %v1372 = vadd.f32 %v1213, %v1371
  %v1373 = vpop.f32.mrb[0].mxu0
  %1374 = vmatprep.mubr.bf16.mxu0 0
  %1375 = vmatmul.mubr.bf16.gmra.mrb[0].mxu0 %v1260
  %v1376 = vpop.f32.mrb[0].mxu0
  %v1377 = vadd.f32 %v1213, %v1376
  %v1378 = vpop.f32.mrb[0].mxu0
  %v1379 = vpop.f32.mrb[0].mxu0
  %v1380 = vadd.f32 %v1213, %v1379
  %v1381 = vpop.f32.mrb[0].mxu0
  %1382 = vmatprep.mubr.bf16.mxu0 0
  %1383 = vmatmul.mubr.bf16.gmra.mrb[0].mxu0 %v1263
  %v1384 = vpop.f32.mrb[0].mxu0
  %v1385 = vadd.f32 %v1213, %v1384
  %v1386 = vpop.f32.mrb[0].mxu0
  %v1387 = vpop.f32.mrb[0].mxu0
  %v1388 = vadd.f32 %v1213, %v1387
  %v1389 = vpop.f32.mrb[0].mxu0
  %1390 = vmatprep.mubr.bf16.mxu0 0
  %1391 = vmatmul.mubr.bf16.gmra.mrb[0].mxu0 %v1266
  %v1392 = vpop.f32.mrb[0].mxu0
  %v1393 = vadd.f32 %v1213, %v1392
  %v1394 = vpop.f32.mrb[0].mxu0
  %v1395 = vpop.f32.mrb[0].mxu0
  %v1396 = vadd.f32 %v1213, %v1395
  %v1397 = vpop.f32.mrb[0].mxu0
  %1398 = vmatprep.mubr.bf16.mxu0 0
  %1399 = vmatmul.mubr.bf16.gmra.mrb[0].mxu0 %v1269
  %v1400 = vpop.f32.mrb[0].mxu0
  %v1401 = vadd.f32 %v1213, %v1400
  %v1402 = vpop.f32.mrb[0].mxu0
  %v1403 = vpop.f32.mrb[0].mxu0
  %v1404 = vadd.f32 %v1213, %v1403
  %v1405 = vpop.f32.mrb[0].mxu0
  %1406 = vmatprep.mubr.bf16.mxu0 0
  %1407 = vmatmul.mubr.bf16.gmra.mrb[0].mxu0 %v1272
  %v1408 = vpop.f32.mrb[0].mxu0
  %v1409 = vadd.f32 %v1213, %v1408
  %v1410 = vpop.f32.mrb[0].mxu0
  %v1411 = vpop.f32.mrb[0].mxu0
  %v1412 = vadd.f32 %v1213, %v1411
  %v1413 = vpop.f32.mrb[0].mxu0
  %1414 = vmatprep.mubr.bf16.mxu0 0
  %1415 = vmatmul.mubr.bf16.gmra.mrb[0].mxu0 %v1275
  %v1416 = vpop.f32.mrb[0].mxu0
  %v1417 = vadd.f32 %v1213, %v1416
  %v1418 = vpop.f32.mrb[0].mxu0
  %v1419 = vpop.f32.mrb[0].mxu0
  %v1420 = vadd.f32 %v1213, %v1419
  %v1421 = vpop.f32.mrb[0].mxu0
  %1422 = vmatprep.mubr.bf16.mxu0 0
  %1423 = vmatmul.mubr.bf16.gmra.mrb[0].mxu0 %v1278
  %v1424 = vpop.f32.mrb[0].mxu0
  %v1425 = vadd.f32 %v1213, %v1424
  %v1426 = vpop.f32.mrb[0].mxu0
  %v1427 = vpop.f32.mrb[0].mxu0
  %v1428 = vadd.f32 %v1213, %v1427
  %v1429 = vpop.f32.mrb[0].mxu0
  %1430 = vmatprep.mubr.bf16.mxu0 0
  %1431 = vmatmul.mubr.bf16.gmra.mrb[0].mxu0 %v1281
  %v1432 = vpop.f32.mrb[0].mxu0
  %v1433 = vadd.f32 %v1213, %v1432
  %v1434 = vpop.f32.mrb[0].mxu0
  %v1435 = vpop.f32.mrb[0].mxu0
  %v1436 = vadd.f32 %v1213, %v1435
  %v1437 = vpop.f32.mrb[0].mxu0
  %1438 = vmatprep.mubr.bf16.mxu0 0
  %1439 = vmatmul.mubr.bf16.gmra.mrb[0].mxu0 %v1284
  %v1440 = vpop.f32.mrb[0].mxu0
  %v1441 = vadd.f32 %v1213, %v1440
  %v1442 = vpop.f32.mrb[0].mxu0
  %v1443 = vpop.f32.mrb[0].mxu0
  %v1444 = vadd.f32 %v1213, %v1443
  %v1445 = vpop.f32.mrb[0].mxu0
  %1446 = vdwg.mxu0
  %v1447 = vtanh.pop %v1321
  %v1448 = vtanh.pop %v1324
  %v1449 = vtanh.pop %v1329
  %v1450 = vtanh.pop %v1332
  %v1451 = vtanh.pop %v1337
  %v1452 = vtanh.pop %v1340
  %v1453 = vtanh.pop %v1345
  %v1454 = vtanh.pop %v1348
  %v1455 = vtanh.pop %v1353
  %v1456 = vtanh.pop %v1356
  %v1457 = vtanh.pop %v1361
  %v1458 = vtanh.pop %v1364
  %v1459 = vtanh.pop %v1369
  %v1460 = vtanh.pop %v1372
  %v1461 = vtanh.pop %v1377
  %v1462 = vtanh.pop %v1380
  %v1463 = vtanh.pop %v1385
  %v1464 = vtanh.pop %v1388
  %v1465 = vtanh.pop %v1393
  %v1466 = vtanh.pop %v1396
  %v1467 = vtanh.pop %v1401
  %v1468 = vtanh.pop %v1404
  %v1469 = vtanh.pop %v1409
  %v1470 = vtanh.pop %v1412
  %v1471 = vtanh.pop %v1417
  %v1472 = vtanh.pop %v1420
  %v1473 = vtanh.pop %v1425
  %v1474 = vtanh.pop %v1428
  %v1475 = vtanh.pop %v1433
  %v1476 = vtanh.pop %v1436
  %v1477 = vtanh.pop %v1441
  %v1478 = vtanh.pop %v1444
  %v1479 = vpack.c.bf16 %v1448, %v1447
  %v1480 = vpack.c.bf16 %v1450, %v1449
  %v1481 = vpack.c.bf16 %v1452, %v1451
  %v1482 = vpack.c.bf16 %v1454, %v1453
  %v1483 = vpack.c.bf16 %v1456, %v1455
  %v1484 = vpack.c.bf16 %v1458, %v1457
  %v1485 = vpack.c.bf16 %v1460, %v1459
  %v1486 = vpack.c.bf16 %v1462, %v1461
  %v1487 = vpack.c.bf16 %v1464, %v1463
  %v1488 = vpack.c.bf16 %v1466, %v1465
  %v1489 = vpack.c.bf16 %v1468, %v1467
  %v1490 = vpack.c.bf16 %v1470, %v1469
  %v1491 = vpack.c.bf16 %v1472, %v1471
  %v1492 = vpack.c.bf16 %v1474, %v1473
  %v1493 = vpack.c.bf16 %v1476, %v1475
  %v1494 = vpack.c.bf16 %v1478, %v1477
  %v1495 = vld [vmem:[%s2 + $0x100] sm:$0xff]
  %v1496 = vld [vmem:[%s2 + $0x108] sm:$0xff]
  %v1497 = vld [vmem:[%s2 + $0x110] sm:$0xff]
  %v1498 = vld [vmem:[%s2 + $0x118] sm:$0xff]
  %v1499 = vld [vmem:[%s2 + $0x120] sm:$0xff]
  %v1500 = vld [vmem:[%s2 + $0x128] sm:$0xff]
  %v1501 = vld [vmem:[%s2 + $0x130] sm:$0xff]
  %v1502 = vld [vmem:[%s2 + $0x138] sm:$0xff]
  %v1503 = vld [vmem:[%s2 + $0x140] sm:$0xff]
  %v1504 = vld [vmem:[%s2 + $0x148] sm:$0xff]
  %v1505 = vld [vmem:[%s2 + $0x150] sm:$0xff]
  %v1506 = vld [vmem:[%s2 + $0x158] sm:$0xff]
  %v1507 = vld [vmem:[%s2 + $0x160] sm:$0xff]
  %v1508 = vld [vmem:[%s2 + $0x168] sm:$0xff]
  %v1509 = vld [vmem:[%s2 + $0x170] sm:$0xff]
  %v1510 = vld [vmem:[%s2 + $0x178] sm:$0xff]
  %v1511 = vlaneseq
  %v1512 = vshrl.u32 %v1511, 7
  %v1513 = vsub.s32 3, %v1512
  %v1514 = vrot.slane %v20, %v1513
  %v1515 = vlaneseq
  %v1516 = vshrl.u32 %v1515, 7
  %v1517 = vsub.s32 3, %v1516
  %v1518 = vrot.slane %v21, %v1517
  %v1535 = vunpack.c.l.b16 %v1495
  %v1536 = vunpack.c.h.b16 %v1495
  %v1537 = vunpack.c.l.b16 %v1496
  %v1538 = vunpack.c.h.b16 %v1496
  %v1539 = vunpack.c.l.b16 %v1497
  %v1540 = vunpack.c.h.b16 %v1497
  %v1541 = vunpack.c.l.b16 %v1498
  %v1542 = vunpack.c.h.b16 %v1498
  %v1543 = vunpack.c.l.b16 %v1499
  %v1544 = vunpack.c.h.b16 %v1499
  %v1545 = vunpack.c.l.b16 %v1500
  %v1546 = vunpack.c.h.b16 %v1500
  %v1547 = vunpack.c.l.b16 %v1501
  %v1548 = vunpack.c.h.b16 %v1501
  %v1549 = vunpack.c.l.b16 %v1502
  %v1550 = vunpack.c.h.b16 %v1502
  %v1551 = vunpack.c.l.b16 %v1503
  %v1552 = vunpack.c.h.b16 %v1503
  %v1553 = vunpack.c.l.b16 %v1504
  %v1554 = vunpack.c.h.b16 %v1504
  %v1555 = vunpack.c.l.b16 %v1505
  %v1556 = vunpack.c.h.b16 %v1505
  %v1557 = vunpack.c.l.b16 %v1506
  %v1558 = vunpack.c.h.b16 %v1506
  %v1559 = vunpack.c.l.b16 %v1507
  %v1560 = vunpack.c.h.b16 %v1507
  %v1561 = vunpack.c.l.b16 %v1508
  %v1562 = vunpack.c.h.b16 %v1508
  %v1563 = vunpack.c.l.b16 %v1509
  %v1564 = vunpack.c.h.b16 %v1509
  %v1565 = vunpack.c.l.b16 %v1510
  %v1566 = vunpack.c.h.b16 %v1510
  %v1567 = vpack.c.b16 %v1537, %v1535
  %v1568 = vpack.c.b16 %v1538, %v1536
  %v1569 = vpack.c.b16 %v1541, %v1539
  %v1570 = vpack.c.b16 %v1542, %v1540
  %v1571 = vpack.c.b16 %v1545, %v1543
  %v1572 = vpack.c.b16 %v1546, %v1544
  %v1573 = vpack.c.b16 %v1549, %v1547
  %v1574 = vpack.c.b16 %v1550, %v1548
  %v1575 = vpack.c.b16 %v1553, %v1551
  %v1576 = vpack.c.b16 %v1554, %v1552
  %v1577 = vpack.c.b16 %v1557, %v1555
  %v1578 = vpack.c.b16 %v1558, %v1556
  %v1579 = vpack.c.b16 %v1561, %v1559
  %v1580 = vpack.c.b16 %v1562, %v1560
  %v1581 = vpack.c.b16 %v1565, %v1563
  %v1582 = vpack.c.b16 %v1566, %v1564
  %1599 = vmatprep.subr.bf16.mxu0 %v1568
  %1600 = vmatpush1.bf16.msra.mxu0 %v1567
  %1601 = vmatprep.subr.bf16.mxu0 %v1570
  %1602 = vmatpush1.bf16.msra.mxu0 %v1569
  %1603 = vmatprep.subr.bf16.mxu0 %v1572
  %1604 = vmatpush1.bf16.msra.mxu0 %v1571
  %1605 = vmatprep.subr.bf16.mxu0 %v1574
  %1606 = vmatpush1.bf16.msra.mxu0 %v1573
  %1607 = vmatprep.subr.bf16.mxu0 %v1576
  %1608 = vmatpush1.bf16.msra.mxu0 %v1575
  %1609 = vmatprep.subr.bf16.mxu0 %v1578
  %1610 = vmatpush1.bf16.msra.mxu0 %v1577
  %1611 = vmatprep.subr.bf16.mxu0 %v1580
  %1612 = vmatpush1.bf16.msra.mxu0 %v1579
  %1613 = vmatprep.subr.bf16.mxu0 %v1582
  %1614 = vmatpush1.bf16.msra.mxu0 %v1581
  %1615 = vmatprep.subr.bf16.mxu0 0
  %1616 = vmatpush1.bf16.msra.mxu0 0
  %1617 = vmatprep.subr.bf16.mxu0 0
  %1618 = vmatpush1.bf16.msra.mxu0 0
  %1619 = vmatprep.subr.bf16.mxu0 0
  %1620 = vmatpush1.bf16.msra.mxu0 0
  %1621 = vmatprep.subr.bf16.mxu0 0
  %1622 = vmatpush1.bf16.msra.mxu0 0
  %1623 = vmatprep.subr.bf16.mxu0 0
  %1624 = vmatpush1.bf16.msra.mxu0 0
  %1625 = vmatprep.subr.bf16.mxu0 0
  %1626 = vmatpush1.bf16.msra.mxu0 0
  %1627 = vmatprep.subr.bf16.mxu0 0
  %1628 = vmatpush1.bf16.msra.mxu0 0
  %1629 = vmatprep.subr.bf16.mxu0 0
  %1630 = vmatpush1.bf16.msra.mxu0 0
  %1631 = vmatprep.mubr.bf16.mxu0 0
  %1632 = vmatmul.mubr.bf16.gmra.mrb[0].mxu0 %v1479
  %v1633 = vpop.f32.mrb[0].mxu0
  %v1634 = vadd.f32 %v1514, %v1633
  %v1635 = vpop.f32.mrb[0].mxu0
  %v1636 = vadd.f32 %v1518, %v1635
  %v1637 = vpop.f32.mrb[0].mxu0
  %v1638 = vadd.f32 %v1514, %v1637
  %v1639 = vpop.f32.mrb[0].mxu0
  %v1640 = vadd.f32 %v1518, %v1639
  %1641 = vmatprep.mubr.bf16.mxu0 0
  %1642 = vmatmul.mubr.bf16.gmra.mrb[0].mxu0 %v1480
  %v1643 = vpop.f32.mrb[0].mxu0
  %v1644 = vadd.f32 %v1514, %v1643
  %v1645 = vpop.f32.mrb[0].mxu0
  %v1646 = vadd.f32 %v1518, %v1645
  %v1647 = vpop.f32.mrb[0].mxu0
  %v1648 = vadd.f32 %v1514, %v1647
  %v1649 = vpop.f32.mrb[0].mxu0
  %v1650 = vadd.f32 %v1518, %v1649
  %1651 = vmatprep.mubr.bf16.mxu0 0
  %1652 = vmatmul.mubr.bf16.gmra.mrb[0].mxu0 %v1481
  %v1653 = vpop.f32.mrb[0].mxu0
  %v1654 = vadd.f32 %v1514, %v1653
  %v1655 = vpop.f32.mrb[0].mxu0
  %v1656 = vadd.f32 %v1518, %v1655
  %v1657 = vpop.f32.mrb[0].mxu0
  %v1658 = vadd.f32 %v1514, %v1657
  %v1659 = vpop.f32.mrb[0].mxu0
  %v1660 = vadd.f32 %v1518, %v1659
  %1661 = vmatprep.mubr.bf16.mxu0 0
  %1662 = vmatmul.mubr.bf16.gmra.mrb[0].mxu0 %v1482
  %v1663 = vpop.f32.mrb[0].mxu0
  %v1664 = vadd.f32 %v1514, %v1663
  %v1665 = vpop.f32.mrb[0].mxu0
  %v1666 = vadd.f32 %v1518, %v1665
  %v1667 = vpop.f32.mrb[0].mxu0
  %v1668 = vadd.f32 %v1514, %v1667
  %v1669 = vpop.f32.mrb[0].mxu0
  %v1670 = vadd.f32 %v1518, %v1669
  %1671 = vmatprep.mubr.bf16.mxu0 0
  %1672 = vmatmul.mubr.bf16.gmra.mrb[0].mxu0 %v1483
  %v1673 = vpop.f32.mrb[0].mxu0
  %v1674 = vadd.f32 %v1514, %v1673
  %v1675 = vpop.f32.mrb[0].mxu0
  %v1676 = vadd.f32 %v1518, %v1675
  %v1677 = vpop.f32.mrb[0].mxu0
  %v1678 = vadd.f32 %v1514, %v1677
  %v1679 = vpop.f32.mrb[0].mxu0
  %v1680 = vadd.f32 %v1518, %v1679
  %1681 = vmatprep.mubr.bf16.mxu0 0
  %1682 = vmatmul.mubr.bf16.gmra.mrb[0].mxu0 %v1484
  %v1683 = vpop.f32.mrb[0].mxu0
  %v1684 = vadd.f32 %v1514, %v1683
  %v1685 = vpop.f32.mrb[0].mxu0
  %v1686 = vadd.f32 %v1518, %v1685
  %v1687 = vpop.f32.mrb[0].mxu0
  %v1688 = vadd.f32 %v1514, %v1687
  %v1689 = vpop.f32.mrb[0].mxu0
  %v1690 = vadd.f32 %v1518, %v1689
  %1691 = vmatprep.mubr.bf16.mxu0 0
  %1692 = vmatmul.mubr.bf16.gmra.mrb[0].mxu0 %v1485
  %v1693 = vpop.f32.mrb[0].mxu0
  %v1694 = vadd.f32 %v1514, %v1693
  %v1695 = vpop.f32.mrb[0].mxu0
  %v1696 = vadd.f32 %v1518, %v1695
  %v1697 = vpop.f32.mrb[0].mxu0
  %v1698 = vadd.f32 %v1514, %v1697
  %v1699 = vpop.f32.mrb[0].mxu0
  %v1700 = vadd.f32 %v1518, %v1699
  %1701 = vmatprep.mubr.bf16.mxu0 0
  %1702 = vmatmul.mubr.bf16.gmra.mrb[0].mxu0 %v1486
  %v1703 = vpop.f32.mrb[0].mxu0
  %v1704 = vadd.f32 %v1514, %v1703
  %v1705 = vpop.f32.mrb[0].mxu0
  %v1706 = vadd.f32 %v1518, %v1705
  %v1707 = vpop.f32.mrb[0].mxu0
  %v1708 = vadd.f32 %v1514, %v1707
  %v1709 = vpop.f32.mrb[0].mxu0
  %v1710 = vadd.f32 %v1518, %v1709
  %1711 = vmatprep.mubr.bf16.mxu0 0
  %1712 = vmatmul.mubr.bf16.gmra.mrb[0].mxu0 %v1487
  %v1713 = vpop.f32.mrb[0].mxu0
  %v1714 = vadd.f32 %v1514, %v1713
  %v1715 = vpop.f32.mrb[0].mxu0
  %v1716 = vadd.f32 %v1518, %v1715
  %v1717 = vpop.f32.mrb[0].mxu0
  %v1718 = vadd.f32 %v1514, %v1717
  %v1719 = vpop.f32.mrb[0].mxu0
  %v1720 = vadd.f32 %v1518, %v1719
  %1721 = vmatprep.mubr.bf16.mxu0 0
  %1722 = vmatmul.mubr.bf16.gmra.mrb[0].mxu0 %v1488
  %v1723 = vpop.f32.mrb[0].mxu0
  %v1724 = vadd.f32 %v1514, %v1723
  %v1725 = vpop.f32.mrb[0].mxu0
  %v1726 = vadd.f32 %v1518, %v1725
  %v1727 = vpop.f32.mrb[0].mxu0
  %v1728 = vadd.f32 %v1514, %v1727
  %v1729 = vpop.f32.mrb[0].mxu0
  %v1730 = vadd.f32 %v1518, %v1729
  %1731 = vmatprep.mubr.bf16.mxu0 0
  %1732 = vmatmul.mubr.bf16.gmra.mrb[0].mxu0 %v1489
  %v1733 = vpop.f32.mrb[0].mxu0
  %v1734 = vadd.f32 %v1514, %v1733
  %v1735 = vpop.f32.mrb[0].mxu0
  %v1736 = vadd.f32 %v1518, %v1735
  %v1737 = vpop.f32.mrb[0].mxu0
  %v1738 = vadd.f32 %v1514, %v1737
  %v1739 = vpop.f32.mrb[0].mxu0
  %v1740 = vadd.f32 %v1518, %v1739
  %1741 = vmatprep.mubr.bf16.mxu0 0
  %1742 = vmatmul.mubr.bf16.gmra.mrb[0].mxu0 %v1490
  %v1743 = vpop.f32.mrb[0].mxu0
  %v1744 = vadd.f32 %v1514, %v1743
  %v1745 = vpop.f32.mrb[0].mxu0
  %v1746 = vadd.f32 %v1518, %v1745
  %v1747 = vpop.f32.mrb[0].mxu0
  %v1748 = vadd.f32 %v1514, %v1747
  %v1749 = vpop.f32.mrb[0].mxu0
  %v1750 = vadd.f32 %v1518, %v1749
  %1751 = vmatprep.mubr.bf16.mxu0 0
  %1752 = vmatmul.mubr.bf16.gmra.mrb[0].mxu0 %v1491
  %v1753 = vpop.f32.mrb[0].mxu0
  %v1754 = vadd.f32 %v1514, %v1753
  %v1755 = vpop.f32.mrb[0].mxu0
  %v1756 = vadd.f32 %v1518, %v1755
  %v1757 = vpop.f32.mrb[0].mxu0
  %v1758 = vadd.f32 %v1514, %v1757
  %v1759 = vpop.f32.mrb[0].mxu0
  %v1760 = vadd.f32 %v1518, %v1759
  %1761 = vmatprep.mubr.bf16.mxu0 0
  %1762 = vmatmul.mubr.bf16.gmra.mrb[0].mxu0 %v1492
  %v1763 = vpop.f32.mrb[0].mxu0
  %v1764 = vadd.f32 %v1514, %v1763
  %v1765 = vpop.f32.mrb[0].mxu0
  %v1766 = vadd.f32 %v1518, %v1765
  %v1767 = vpop.f32.mrb[0].mxu0
  %v1768 = vadd.f32 %v1514, %v1767
  %v1769 = vpop.f32.mrb[0].mxu0
  %v1770 = vadd.f32 %v1518, %v1769
  %1771 = vmatprep.mubr.bf16.mxu0 0
  %1772 = vmatmul.mubr.bf16.gmra.mrb[0].mxu0 %v1493
  %v1773 = vpop.f32.mrb[0].mxu0
  %v1774 = vadd.f32 %v1514, %v1773
  %v1775 = vpop.f32.mrb[0].mxu0
  %v1776 = vadd.f32 %v1518, %v1775
  %v1777 = vpop.f32.mrb[0].mxu0
  %v1778 = vadd.f32 %v1514, %v1777
  %v1779 = vpop.f32.mrb[0].mxu0
  %v1780 = vadd.f32 %v1518, %v1779
  %1781 = vmatprep.mubr.bf16.mxu0 0
  %1782 = vmatmul.mubr.bf16.gmra.mrb[0].mxu0 %v1494
  %v1783 = vpop.f32.mrb[0].mxu0
  %v1784 = vadd.f32 %v1514, %v1783
  %v1785 = vpop.f32.mrb[0].mxu0
  %v1786 = vadd.f32 %v1518, %v1785
  %v1787 = vpop.f32.mrb[0].mxu0
  %v1788 = vadd.f32 %v1514, %v1787
  %v1789 = vpop.f32.mrb[0].mxu0
  %v1790 = vadd.f32 %v1518, %v1789
  %1791 = vdwg.mxu0
  %v1792 = vpack.c.bf16 %v1638, %v1634
  %v1793 = vpack.c.bf16 %v1648, %v1644
  %v1794 = vpack.c.bf16 %v1658, %v1654
  %v1795 = vpack.c.bf16 %v1668, %v1664
  %v1796 = vpack.c.bf16 %v1678, %v1674
  %v1797 = vpack.c.bf16 %v1688, %v1684
  %v1798 = vpack.c.bf16 %v1698, %v1694
  %v1799 = vpack.c.bf16 %v1708, %v1704
  %v1800 = vpack.c.bf16 %v1718, %v1714
  %v1801 = vpack.c.bf16 %v1728, %v1724
  %v1802 = vpack.c.bf16 %v1738, %v1734
  %v1803 = vpack.c.bf16 %v1748, %v1744
  %v1804 = vpack.c.bf16 %v1758, %v1754
  %v1805 = vpack.c.bf16 %v1768, %v1764
  %v1806 = vpack.c.bf16 %v1778, %v1774
  %v1807 = vpack.c.bf16 %v1788, %v1784
  %v1824 = vunpack.c.l.b16 %v1792
  %v1825 = vunpack.c.h.b16 %v1792
  %v1826 = vunpack.c.l.b16 %v1793
  %v1827 = vunpack.c.h.b16 %v1793
  %v1828 = vunpack.c.l.b16 %v1794
  %v1829 = vunpack.c.h.b16 %v1794
  %v1830 = vunpack.c.l.b16 %v1795
  %v1831 = vunpack.c.h.b16 %v1795
  %v1832 = vunpack.c.l.b16 %v1796
  %v1833 = vunpack.c.h.b16 %v1796
  %v1834 = vunpack.c.l.b16 %v1797
  %v1835 = vunpack.c.h.b16 %v1797
  %v1836 = vunpack.c.l.b16 %v1798
  %v1837 = vunpack.c.h.b16 %v1798
  %v1838 = vunpack.c.l.b16 %v1799
  %v1839 = vunpack.c.h.b16 %v1799
  %v1840 = vunpack.c.l.b16 %v1800
  %v1841 = vunpack.c.h.b16 %v1800
  %v1842 = vunpack.c.l.b16 %v1801
  %v1843 = vunpack.c.h.b16 %v1801
  %v1844 = vunpack.c.l.b16 %v1802
  %v1845 = vunpack.c.h.b16 %v1802
  %v1846 = vunpack.c.l.b16 %v1803
  %v1847 = vunpack.c.h.b16 %v1803
  %v1848 = vunpack.c.l.b16 %v1804
  %v1849 = vunpack.c.h.b16 %v1804
  %v1850 = vunpack.c.l.b16 %v1805
  %v1851 = vunpack.c.h.b16 %v1805
  %v1852 = vunpack.c.l.b16 %v1806
  %v1853 = vunpack.c.h.b16 %v1806
  %v1854 = vunpack.c.l.b16 %v1807
  %v1855 = vunpack.c.h.b16 %v1807
  %v1856 = vpack.c.b16 %v1824, %v1824
  %v1857 = vpack.c.b16 %v1825, %v1825
  %v1858 = vpack.c.b16 %v1826, %v1826
  %v1859 = vpack.c.b16 %v1827, %v1827
  %v1860 = vpack.c.b16 %v1828, %v1828
  %v1861 = vpack.c.b16 %v1829, %v1829
  %v1862 = vpack.c.b16 %v1830, %v1830
  %v1863 = vpack.c.b16 %v1831, %v1831
  %v1864 = vpack.c.b16 %v1832, %v1832
  %v1865 = vpack.c.b16 %v1833, %v1833
  %v1866 = vpack.c.b16 %v1834, %v1834
  %v1867 = vpack.c.b16 %v1835, %v1835
  %v1868 = vpack.c.b16 %v1836, %v1836
  %v1869 = vpack.c.b16 %v1837, %v1837
  %v1870 = vpack.c.b16 %v1838, %v1838
  %v1871 = vpack.c.b16 %v1839, %v1839
  %v1872 = vpack.c.b16 %v1840, %v1840
  %v1873 = vpack.c.b16 %v1841, %v1841
  %v1874 = vpack.c.b16 %v1842, %v1842
  %v1875 = vpack.c.b16 %v1843, %v1843
  %v1876 = vpack.c.b16 %v1844, %v1844
  %v1877 = vpack.c.b16 %v1845, %v1845
  %v1878 = vpack.c.b16 %v1846, %v1846
  %v1879 = vpack.c.b16 %v1847, %v1847
  %v1880 = vpack.c.b16 %v1848, %v1848
  %v1881 = vpack.c.b16 %v1849, %v1849
  %v1882 = vpack.c.b16 %v1850, %v1850
  %v1883 = vpack.c.b16 %v1851, %v1851
  %v1884 = vpack.c.b16 %v1852, %v1852
  %v1885 = vpack.c.b16 %v1853, %v1853
  %v1886 = vpack.c.b16 %v1854, %v1854
  %v1887 = vpack.c.b16 %v1855, %v1855
  %1920 = vst [vmem:[%s4] sm:$0xf] %v1856
  %1921 = vst [vmem:[%s4 + $0x4] sm:$0xf] %v1857
  %1922 = vst [vmem:[%s4 + $0x8] sm:$0xf] %v1858
  %1923 = vst [vmem:[%s4 + $0xc] sm:$0xf] %v1859
  %1924 = vst [vmem:[%s4 + $0x10] sm:$0xf] %v1860
  %1925 = vst [vmem:[%s4 + $0x14] sm:$0xf] %v1861
  %1926 = vst [vmem:[%s4 + $0x18] sm:$0xf] %v1862
  %1927 = vst [vmem:[%s4 + $0x1c] sm:$0xf] %v1863
  %1928 = vst [vmem:[%s4 + $0x20] sm:$0xf] %v1864
  %1929 = vst [vmem:[%s4 + $0x24] sm:$0xf] %v1865
  %1930 = vst [vmem:[%s4 + $0x28] sm:$0xf] %v1866
  %1931 = vst [vmem:[%s4 + $0x2c] sm:$0xf] %v1867
  %1932 = vst [vmem:[%s4 + $0x30] sm:$0xf] %v1868
  %1933 = vst [vmem:[%s4 + $0x34] sm:$0xf] %v1869
  %1934 = vst [vmem:[%s4 + $0x38] sm:$0xf] %v1870
  %1935 = vst [vmem:[%s4 + $0x3c] sm:$0xf] %v1871
  %1936 = vst [vmem:[%s4 + $0x40] sm:$0xf] %v1872
  %1937 = vst [vmem:[%s4 + $0x44] sm:$0xf] %v1873
  %1938 = vst [vmem:[%s4 + $0x48] sm:$0xf] %v1874
  %1939 = vst [vmem:[%s4 + $0x4c] sm:$0xf] %v1875
  %1940 = vst [vmem:[%s4 + $0x50] sm:$0xf] %v1876
  %1941 = vst [vmem:[%s4 + $0x54] sm:$0xf] %v1877
  %1942 = vst [vmem:[%s4 + $0x58] sm:$0xf] %v1878
  %1943 = vst [vmem:[%s4 + $0x5c] sm:$0xf] %v1879
  %1944 = vst [vmem:[%s4 + $0x60] sm:$0xf] %v1880
  %1945 = vst [vmem:[%s4 + $0x64] sm:$0xf] %v1881
  %1946 = vst [vmem:[%s4 + $0x68] sm:$0xf] %v1882
  %1947 = vst [vmem:[%s4 + $0x6c] sm:$0xf] %v1883
  %1948 = vst [vmem:[%s4 + $0x70] sm:$0xf] %v1884
  %1949 = vst [vmem:[%s4 + $0x74] sm:$0xf] %v1885
  %1950 = vst [vmem:[%s4 + $0x78] sm:$0xf] %v1886
  %1951 = vst [vmem:[%s4 + $0x7c] sm:$0xf] %v1887
  %1984 = vrot.lane.b32.xlu0 %v1636, 64
  %v1985 = vpop.permute.xlu0 %1984
  %1986 = vrot.lane.b32.xlu0 %v1640, 64
  %v1987 = vpop.permute.xlu0 %1986
  %1988 = vrot.lane.b32.xlu0 %v1646, 64
  %v1989 = vpop.permute.xlu0 %1988
  %1990 = vrot.lane.b32.xlu0 %v1650, 64
  %v1991 = vpop.permute.xlu0 %1990
  %1992 = vrot.lane.b32.xlu0 %v1656, 64
  %v1993 = vpop.permute.xlu0 %1992
  %1994 = vrot.lane.b32.xlu0 %v1660, 64
  %v1995 = vpop.permute.xlu0 %1994
  %1996 = vrot.lane.b32.xlu0 %v1666, 64
  %v1997 = vpop.permute.xlu0 %1996
  %1998 = vrot.lane.b32.xlu0 %v1670, 64
  %v1999 = vpop.permute.xlu0 %1998
  %2000 = vrot.lane.b32.xlu0 %v1676, 64
  %v2001 = vpop.permute.xlu0 %2000
  %2002 = vrot.lane.b32.xlu0 %v1680, 64
  %v2003 = vpop.permute.xlu0 %2002
  %2004 = vrot.lane.b32.xlu0 %v1686, 64
  %v2005 = vpop.permute.xlu0 %2004
  %2006 = vrot.lane.b32.xlu0 %v1690, 64
  %v2007 = vpop.permute.xlu0 %2006
  %2008 = vrot.lane.b32.xlu0 %v1696, 64
  %v2009 = vpop.permute.xlu0 %2008
  %2010 = vrot.lane.b32.xlu0 %v1700, 64
  %v2011 = vpop.permute.xlu0 %2010
  %2012 = vrot.lane.b32.xlu0 %v1706, 64
  %v2013 = vpop.permute.xlu0 %2012
  %2014 = vrot.lane.b32.xlu0 %v1710, 64
  %v2015 = vpop.permute.xlu0 %2014
  %2016 = vrot.lane.b32.xlu0 %v1716, 64
  %v2017 = vpop.permute.xlu0 %2016
  %2018 = vrot.lane.b32.xlu0 %v1720, 64
  %v2019 = vpop.permute.xlu0 %2018
  %2020 = vrot.lane.b32.xlu0 %v1726, 64
  %v2021 = vpop.permute.xlu0 %2020
  %2022 = vrot.lane.b32.xlu0 %v1730, 64
  %v2023 = vpop.permute.xlu0 %2022
  %2024 = vrot.lane.b32.xlu0 %v1736, 64
  %v2025 = vpop.permute.xlu0 %2024
  %2026 = vrot.lane.b32.xlu0 %v1740, 64
  %v2027 = vpop.permute.xlu0 %2026
  %2028 = vrot.lane.b32.xlu0 %v1746, 64
  %v2029 = vpop.permute.xlu0 %2028
  %2030 = vrot.lane.b32.xlu0 %v1750, 64
  %v2031 = vpop.permute.xlu0 %2030
  %2032 = vrot.lane.b32.xlu0 %v1756, 64
  %v2033 = vpop.permute.xlu0 %2032
  %2034 = vrot.lane.b32.xlu0 %v1760, 64
  %v2035 = vpop.permute.xlu0 %2034
  %2036 = vrot.lane.b32.xlu0 %v1766, 64
  %v2037 = vpop.permute.xlu0 %2036
  %2038 = vrot.lane.b32.xlu0 %v1770, 64
  %v2039 = vpop.permute.xlu0 %2038
  %2040 = vrot.lane.b32.xlu0 %v1776, 64
  %v2041 = vpop.permute.xlu0 %2040
  %2042 = vrot.lane.b32.xlu0 %v1780, 64
  %v2043 = vpop.permute.xlu0 %2042
  %2044 = vrot.lane.b32.xlu0 %v1786, 64
  %v2045 = vpop.permute.xlu0 %2044
  %2046 = vrot.lane.b32.xlu0 %v1790, 64
  %v2047 = vpop.permute.xlu0 %2046
  %v2080 = vsel %vm463, %v547, %v1985
  %v2081 = vsel %vm463, %v550, %v1987
  %v2082 = vsel %vm463, %v555, %v1989
  %v2083 = vsel %vm463, %v558, %v1991
  %v2084 = vsel %vm463, %v563, %v1993
  %v2085 = vsel %vm463, %v566, %v1995
  %v2086 = vsel %vm463, %v571, %v1997
  %v2087 = vsel %vm463, %v574, %v1999
  %v2088 = vsel %vm463, %v579, %v2001
  %v2089 = vsel %vm463, %v582, %v2003
  %v2090 = vsel %vm463, %v587, %v2005
  %v2091 = vsel %vm463, %v590, %v2007
  %v2092 = vsel %vm463, %v595, %v2009
  %v2093 = vsel %vm463, %v598, %v2011
  %v2094 = vsel %vm463, %v603, %v2013
  %v2095 = vsel %vm463, %v606, %v2015
  %v2096 = vsel %vm463, %v611, %v2017
  %v2097 = vsel %vm463, %v614, %v2019
  %v2098 = vsel %vm463, %v619, %v2021
  %v2099 = vsel %vm463, %v622, %v2023
  %v2100 = vsel %vm463, %v627, %v2025
  %v2101 = vsel %vm463, %v630, %v2027
  %v2102 = vsel %vm463, %v635, %v2029
  %v2103 = vsel %vm463, %v638, %v2031
  %v2104 = vsel %vm463, %v643, %v2033
  %v2105 = vsel %vm463, %v646, %v2035
  %v2106 = vsel %vm463, %v651, %v2037
  %v2107 = vsel %vm463, %v654, %v2039
  %v2108 = vsel %vm463, %v659, %v2041
  %v2109 = vsel %vm463, %v662, %v2043
  %v2110 = vsel %vm463, %v667, %v2045
  %v2111 = vsel %vm463, %v670, %v2047
  %v2112 = vpack.c.bf16 %v2081, %v2080
  %v2113 = vpack.c.bf16 %v2083, %v2082
  %v2114 = vpack.c.bf16 %v2085, %v2084
  %v2115 = vpack.c.bf16 %v2087, %v2086
  %v2116 = vpack.c.bf16 %v2089, %v2088
  %v2117 = vpack.c.bf16 %v2091, %v2090
  %v2118 = vpack.c.bf16 %v2093, %v2092
  %v2119 = vpack.c.bf16 %v2095, %v2094
  %v2120 = vpack.c.bf16 %v2097, %v2096
  %v2121 = vpack.c.bf16 %v2099, %v2098
  %v2122 = vpack.c.bf16 %v2101, %v2100
  %v2123 = vpack.c.bf16 %v2103, %v2102
  %v2124 = vpack.c.bf16 %v2105, %v2104
  %v2125 = vpack.c.bf16 %v2107, %v2106
  %v2126 = vpack.c.bf16 %v2109, %v2108
  %v2127 = vpack.c.bf16 %v2111, %v2110
  %v2144 = vunpack.c.l.b16 %v2112
  %v2145 = vunpack.c.h.b16 %v2112
  %v2146 = vunpack.c.l.b16 %v2113
  %v2147 = vunpack.c.h.b16 %v2113
  %v2148 = vunpack.c.l.b16 %v2114
  %v2149 = vunpack.c.h.b16 %v2114
  %v2150 = vunpack.c.l.b16 %v2115
  %v2151 = vunpack.c.h.b16 %v2115
  %v2152 = vunpack.c.l.b16 %v2116
  %v2153 = vunpack.c.h.b16 %v2116
  %v2154 = vunpack.c.l.b16 %v2117
  %v2155 = vunpack.c.h.b16 %v2117
  %v2156 = vunpack.c.l.b16 %v2118
  %v2157 = vunpack.c.h.b16 %v2118
  %v2158 = vunpack.c.l.b16 %v2119
  %v2159 = vunpack.c.h.b16 %v2119
  %v2160 = vunpack.c.l.b16 %v2120
  %v2161 = vunpack.c.h.b16 %v2120
  %v2162 = vunpack.c.l.b16 %v2121
  %v2163 = vunpack.c.h.b16 %v2121
  %v2164 = vunpack.c.l.b16 %v2122
  %v2165 = vunpack.c.h.b16 %v2122
  %v2166 = vunpack.c.l.b16 %v2123
  %v2167 = vunpack.c.h.b16 %v2123
  %v2168 = vunpack.c.l.b16 %v2124
  %v2169 = vunpack.c.h.b16 %v2124
  %v2170 = vunpack.c.l.b16 %v2125
  %v2171 = vunpack.c.h.b16 %v2125
  %v2172 = vunpack.c.l.b16 %v2126
  %v2173 = vunpack.c.h.b16 %v2126
  %v2174 = vunpack.c.l.b16 %v2127
  %v2175 = vunpack.c.h.b16 %v2127
  %v2176 = vpack.c.b16 %v2144, %v2144
  %v2177 = vpack.c.b16 %v2145, %v2145
  %v2178 = vpack.c.b16 %v2146, %v2146
  %v2179 = vpack.c.b16 %v2147, %v2147
  %v2180 = vpack.c.b16 %v2148, %v2148
  %v2181 = vpack.c.b16 %v2149, %v2149
  %v2182 = vpack.c.b16 %v2150, %v2150
  %v2183 = vpack.c.b16 %v2151, %v2151
  %v2184 = vpack.c.b16 %v2152, %v2152
  %v2185 = vpack.c.b16 %v2153, %v2153
  %v2186 = vpack.c.b16 %v2154, %v2154
  %v2187 = vpack.c.b16 %v2155, %v2155
  %v2188 = vpack.c.b16 %v2156, %v2156
  %v2189 = vpack.c.b16 %v2157, %v2157
  %v2190 = vpack.c.b16 %v2158, %v2158
  %v2191 = vpack.c.b16 %v2159, %v2159
  %v2192 = vpack.c.b16 %v2160, %v2160
  %v2193 = vpack.c.b16 %v2161, %v2161
  %v2194 = vpack.c.b16 %v2162, %v2162
  %v2195 = vpack.c.b16 %v2163, %v2163
  %v2196 = vpack.c.b16 %v2164, %v2164
  %v2197 = vpack.c.b16 %v2165, %v2165
  %v2198 = vpack.c.b16 %v2166, %v2166
  %v2199 = vpack.c.b16 %v2167, %v2167
  %v2200 = vpack.c.b16 %v2168, %v2168
  %v2201 = vpack.c.b16 %v2169, %v2169
  %v2202 = vpack.c.b16 %v2170, %v2170
  %v2203 = vpack.c.b16 %v2171, %v2171
  %v2204 = vpack.c.b16 %v2172, %v2172
  %v2205 = vpack.c.b16 %v2173, %v2173
  %v2206 = vpack.c.b16 %v2174, %v2174
  %v2207 = vpack.c.b16 %v2175, %v2175
  %2240 = vst [vmem:[%s5] sm:$0xf] %v2176
  %2241 = vst [vmem:[%s5 + $0x4] sm:$0xf] %v2177
  %2242 = vst [vmem:[%s5 + $0x8] sm:$0xf] %v2178
  %2243 = vst [vmem:[%s5 + $0xc] sm:$0xf] %v2179
  %2244 = vst [vmem:[%s5 + $0x10] sm:$0xf] %v2180
  %2245 = vst [vmem:[%s5 + $0x14] sm:$0xf] %v2181
  %2246 = vst [vmem:[%s5 + $0x18] sm:$0xf] %v2182
  %2247 = vst [vmem:[%s5 + $0x1c] sm:$0xf] %v2183
  %2248 = vst [vmem:[%s5 + $0x20] sm:$0xf] %v2184
  %2249 = vst [vmem:[%s5 + $0x24] sm:$0xf] %v2185
  %2250 = vst [vmem:[%s5 + $0x28] sm:$0xf] %v2186
  %2251 = vst [vmem:[%s5 + $0x2c] sm:$0xf] %v2187
  %2252 = vst [vmem:[%s5 + $0x30] sm:$0xf] %v2188
  %2253 = vst [vmem:[%s5 + $0x34] sm:$0xf] %v2189
  %2254 = vst [vmem:[%s5 + $0x38] sm:$0xf] %v2190
  %2255 = vst [vmem:[%s5 + $0x3c] sm:$0xf] %v2191
  %2256 = vst [vmem:[%s5 + $0x40] sm:$0xf] %v2192
  %2257 = vst [vmem:[%s5 + $0x44] sm:$0xf] %v2193
  %2258 = vst [vmem:[%s5 + $0x48] sm:$0xf] %v2194
  %2259 = vst [vmem:[%s5 + $0x4c] sm:$0xf] %v2195
  %2260 = vst [vmem:[%s5 + $0x50] sm:$0xf] %v2196
  %2261 = vst [vmem:[%s5 + $0x54] sm:$0xf] %v2197
  %2262 = vst [vmem:[%s5 + $0x58] sm:$0xf] %v2198
  %2263 = vst [vmem:[%s5 + $0x5c] sm:$0xf] %v2199
  %2264 = vst [vmem:[%s5 + $0x60] sm:$0xf] %v2200
  %2265 = vst [vmem:[%s5 + $0x64] sm:$0xf] %v2201
  %2266 = vst [vmem:[%s5 + $0x68] sm:$0xf] %v2202
  %2267 = vst [vmem:[%s5 + $0x6c] sm:$0xf] %v2203
  %2268 = vst [vmem:[%s5 + $0x70] sm:$0xf] %v2204
  %2269 = vst [vmem:[%s5 + $0x74] sm:$0xf] %v2205
  %2270 = vst [vmem:[%s5 + $0x78] sm:$0xf] %v2206
  %2271 = vst [vmem:[%s5 + $0x7c] sm:$0xf] %v2207
  // Predicated region
  $region18: #{chemvae_forward.1} parent=0 // pred_check
    _
  $region19: #{chemvae_forward.1} parent=0 // pred_check_branch
    %2273 = sbr.rel (0) target = $region21
  $region20: #{chemvae_forward.1} parent=0 // pred_region
    _
  $region21: #{chemvae_forward.1} parent=0 // pred_fallthru
    _
  // Predicated region
  $region22: #{chemvae_forward.1} parent=0 // pred_check
    _
  $region23: #{chemvae_forward.1} parent=0 // pred_check_branch
    %2275 = sbr.rel (0) target = $region25
  $region24: #{chemvae_forward.1} parent=0 // pred_region
    _
  $region25: #{chemvae_forward.1} parent=0 // pred_fallthru
    _
  // Predicated region
  $region26: #{chemvae_forward.1} parent=0 // pred_check
    _
  $region27: #{chemvae_forward.1} parent=0 // pred_check_branch
    %2277 = sbr.rel (0) target = $region29
  $region28: #{chemvae_forward.1} parent=0 // pred_region
    _
  $region29: #{chemvae_forward.1} parent=0 // pred_fallthru
    _
  // Predicated region
  $region30: #{chemvae_forward.1} parent=0 // pred_check
    _
  $region31: #{chemvae_forward.1} parent=0 // pred_check_branch
    %2279 = sbr.rel (0) target = $region33
  $region32: #{chemvae_forward.1} parent=0 // pred_region
    _
  $region33: #{chemvae_forward.1} parent=0 // pred_fallthru
    _

</llo_original>
